<compile_context>
chip_gen: v5e
topology: v5e:2x2
jax: 0.10.0
libtpu: 0.0.40
codegen_flags: <defaults>
</compile_context>

<pallas_src>
import functools
import math

import jax
import jax.numpy as jnp
from jax.experimental import pallas as pl
from jax.experimental.pallas import tpu as pltpu


# ----------------------------- fused Pallas kernel -----------------------------

def fused_forward_kernel(x_ref, bias_ref, wqkv_ref, bqkv_ref, wo_ref, bo_ref,
                         wcls_ref, bcls_ref, attn_ref, logits_ref,
                         *, num_heads, n_layers):
    """Full SelfAttention forward for ONE batch element (grid over batch).

    x_ref:      (1, S, E)      activations (token emb ++ positional emb)
    bias_ref:   (1, 1, S)      additive key-padding bias (0 or -1e30)
    wqkv_ref:   (L, 3E, E)     stacked in_proj_weight (torch layout [Wq;Wk;Wv])
    bqkv_ref:   (L, 1, 3E)     stacked in_proj_bias
    wo_ref:     (L, E, E)      stacked out_proj.weight
    bo_ref:     (L, 1, E)      stacked out_proj.bias
    wcls_ref:   (C, E)         final Linear weight
    bcls_ref:   (1, C)         final Linear bias
    attn_ref:   (L, 1, S, S)   per-layer attention weights (head-averaged)
    logits_ref: (1, 1, C)      classifier logits for this batch element
    """
    _, S, E = x_ref.shape
    H = num_heads
    Dh = E // H
    scale = jnp.float32(1.0 / math.sqrt(Dh))
    inv_h = jnp.float32(1.0 / H)

    x = x_ref[0]            # (S, E)
    bias = bias_ref[0]      # (1, S), broadcasts over query rows

    for l in range(n_layers):          # static unroll over layers
        qkv = jnp.einsum('se,fe->sf', x, wqkv_ref[l],
                         preferred_element_type=jnp.float32) + bqkv_ref[l]
        q = qkv[:, 0 * E:1 * E] * scale
        k = qkv[:, 1 * E:2 * E]
        v = qkv[:, 2 * E:3 * E]
        wo = wo_ref[l]                  # (E, E)

        attn_sum = jnp.zeros((S, S), jnp.float32)
        y = jnp.broadcast_to(bo_ref[l], (S, E))     # start from out_proj bias
        for h in range(H):              # static unroll over heads (no concat)
            sl = slice(h * Dh, (h + 1) * Dh)
            s = jnp.einsum('qd,kd->qk', q[:, sl], k[:, sl],
                           preferred_element_type=jnp.float32)
            s = s + bias                            # additive key-padding mask
            s = s - jnp.max(s, axis=-1, keepdims=True)
            e = jnp.exp(s)
            denom = jnp.sum(e, axis=-1, keepdims=True)
            p = e * pl.reciprocal(denom, approx=True)   # EUP reciprocal
            attn_sum = attn_sum + p
            oh = jnp.einsum('qk,kd->qd', p, v[:, sl],
                            preferred_element_type=jnp.float32)
            # fold this head's slice of the output projection directly:
            #   y += oh @ Wo[:, h*Dh:(h+1)*Dh]^T
            y = y + jnp.einsum('qd,ed->qe', oh, wo[:, sl],
                               preferred_element_type=jnp.float32)

        x = y
        attn_ref[l, 0] = attn_sum * inv_h

    # classifier on the <cls> position (row 0), fused in the same kernel
    cls = x[0:1, :]                                     # (1, E)
    logits_ref[0] = jnp.einsum('ae,ce->ac', cls, wcls_ref[...],
                               preferred_element_type=jnp.float32) + bcls_ref[...]


# ----------------------------- wrapper -----------------------------

def fused_forward(x, bias, wqkv, bqkv, wo, bo, wcls, bcls, *, num_heads):
    """x: (B,S,E) f32, bias: (B,1,S) f32. Returns (attns (L,B,S,S), logits (B,1,C))."""
    B, S, E = x.shape
    L = wqkv.shape[0]
    C = wcls.shape[0]
    kern = functools.partial(fused_forward_kernel, num_heads=num_heads, n_layers=L)
    attns, logits = pl.pallas_call(
        kern,
        out_shape=(jax.ShapeDtypeStruct((L, B, S, S), jnp.float32),
                   jax.ShapeDtypeStruct((B, 1, C), jnp.float32)),
        grid=(B,),
        in_specs=[
            pl.BlockSpec((1, S, E), lambda b: (b, 0, 0)),        # x
            pl.BlockSpec((1, 1, S), lambda b: (b, 0, 0)),        # additive mask bias
            pl.BlockSpec((L, 3 * E, E), lambda b: (0, 0, 0)),    # stacked Wqkv
            pl.BlockSpec((L, 1, 3 * E), lambda b: (0, 0, 0)),    # stacked bqkv
            pl.BlockSpec((L, E, E), lambda b: (0, 0, 0)),        # stacked Wo
            pl.BlockSpec((L, 1, E), lambda b: (0, 0, 0)),        # stacked bo
            pl.BlockSpec((C, E), lambda b: (0, 0)),              # classifier W
            pl.BlockSpec((1, C), lambda b: (0, 0)),              # classifier b
        ],
        out_specs=(
            pl.BlockSpec((L, 1, S, S), lambda b: (0, b, 0, 0)),  # attn weights
            pl.BlockSpec((1, 1, C), lambda b: (b, 0, 0)),        # logits
        ),
        compiler_params=pltpu.CompilerParams(
            dimension_semantics=("parallel",)),                  # v7x: 2 TCs share batch
    )(x, bias, wqkv, bqkv, wo, bo, wcls, bcls)
    return attns, logits


def self_attention_forward(src_tokens, params, *, pad_idx, cls_idx, num_heads):
    """Mirrors SelfAttention.forward.

    src_tokens: (seq, batch) int32 token ids (seq-first, like PyTorch).
    Returns (logits (batch, n_classes), list of attn weights (batch, S, S)).
    """
    seq, batch = src_tokens.shape

    # Prepend a <cls> row  ->  (S, B),  S = seq + 1
    cls_row = jnp.full((1, batch), cls_idx, dtype=src_tokens.dtype)
    src = jnp.concatenate([cls_row, src_tokens], axis=0)
    S = seq + 1

    # batch-first ids (B, S); build activations batch-first directly (no transpose)
    src_bf = src.T
    # additive key-padding bias: 0 for real keys, -1e30 for <pad> keys
    pad_bias = (src_bf == pad_idx).astype(jnp.float32) * jnp.float32(-1e30)
    pad_bias = pad_bias.reshape(batch, 1, S)

    # token embedding + positional embedding, concat along feature dim (glue)
    tok_emb = params['embedding'][src_bf]                        # (B, S, hidden)
    pos_emb = params['pos_embedding'][jnp.arange(S)]             # (S, pos_enc)
    pos_emb = jnp.broadcast_to(pos_emb[None], (batch, S, pos_emb.shape[-1]))
    x = jnp.concatenate([tok_emb, pos_emb], axis=-1).astype(jnp.float32)  # (B,S,E)

    # stack per-layer weights so the fused kernel can unroll over layers
    wqkv = jnp.stack([l['in_proj_w'] for l in params['layers']])   # (L, 3E, E)
    bqkv = jnp.stack([l['in_proj_b'] for l in params['layers']])   # (L, 1, 3E)
    wo = jnp.stack([l['out_proj_w'] for l in params['layers']])    # (L, E, E)
    bo = jnp.stack([l['out_proj_b'] for l in params['layers']])    # (L, 1, E)

    attns, logits = fused_forward(x, pad_bias, wqkv, bqkv, wo, bo,
                                  params['out_w'], params['out_b'],
                                  num_heads=num_heads)
    logits = logits.reshape(batch, -1)
    return logits, [attns[i] for i in range(attns.shape[0])]


# ----------------------------- main -----------------------------

if __name__ == "__main__":
    # Model hyper-parameters (consistent with the module's constraints)
    vocab_size = 12
    pad_idx = 0
    cls_idx = 1
    hidden_dim = 22
    pos_enc = 10
    n_classes = 5
    num_heads = 2
    n_layers = 2
    E = hidden_dim + pos_enc              # 32, divisible by num_heads
    assert hidden_dim % num_heads == 0
    assert E % num_heads == 0

    key = jax.random.PRNGKey(0)
    keys = jax.random.split(key, 8 + 4 * n_layers)

    # Deterministic synthetic parameters (shapes from __init__)
    embedding = 0.1 * jax.random.normal(keys[0], (vocab_size, hidden_dim), jnp.float32)
    embedding = embedding.at[pad_idx].set(0.0)                     # padding_idx row = 0
    pos_embedding = 0.1 * jax.random.normal(keys[1], (50, pos_enc), jnp.float32)

    layers = []
    for i in range(n_layers):
        k0, k1, k2, k3 = keys[4 + 4 * i: 8 + 4 * i]
        layers.append(dict(
            in_proj_w=(1.0 / math.sqrt(E)) * jax.random.normal(k0, (3 * E, E), jnp.float32),
            in_proj_b=0.01 * jax.random.normal(k1, (1, 3 * E), jnp.float32),
            out_proj_w=(1.0 / math.sqrt(E)) * jax.random.normal(k2, (E, E), jnp.float32),
            out_proj_b=0.01 * jax.random.normal(k3, (1, E), jnp.float32),
        ))

    out_w = (1.0 / math.sqrt(E)) * jax.random.normal(keys[2], (n_classes, E), jnp.float32)
    out_b = 0.01 * jax.random.normal(keys[3], (1, n_classes), jnp.float32)

    params = dict(embedding=embedding, pos_embedding=pos_embedding,
                  layers=layers, out_w=out_w, out_b=out_b)

    # Example input: (seq=8, batch=2) token ids, with trailing pads in column 1
    seq, batch = 8, 2
    src = jax.random.randint(keys[-1], (seq, batch), 2, vocab_size, dtype=jnp.int32)
    src = src.at[6:, 1].set(pad_idx)

    logits, attns = self_attention_forward(src, params, pad_idx=pad_idx,
                                           cls_idx=cls_idx, num_heads=num_heads)
    logits = jax.block_until_ready(logits)
    for a in attns:
        jax.block_until_ready(a)

    assert logits.shape == (batch, n_classes)
    assert all(a.shape == (batch, seq + 1, seq + 1) for a in attns)
    assert bool(jnp.all(jnp.isfinite(logits)))
    print("KERNEL_OK")
</pallas_src>

<mosaic_0001>
module attributes {stable_mosaic.version = 11 : i64} {
  func.func @fused_forward_kernel(%arg0: i32, %arg1: memref<1x9x32xf32, #tpu.memory_space<vmem>>, %arg2: memref<1x1x9xf32, #tpu.memory_space<vmem>>, %arg3: memref<2x96x32xf32, #tpu.memory_space<vmem>>, %arg4: memref<2x1x96xf32, #tpu.memory_space<vmem>>, %arg5: memref<2x32x32xf32, #tpu.memory_space<vmem>>, %arg6: memref<2x1x32xf32, #tpu.memory_space<vmem>>, %arg7: memref<5x32xf32, #tpu.memory_space<vmem>>, %arg8: memref<1x5xf32, #tpu.memory_space<vmem>>, %arg9: memref<2x1x9x9xf32, #tpu.memory_space<vmem>>, %arg10: memref<1x1x5xf32, #tpu.memory_space<vmem>>) attributes {dimension_semantics = [#tpu.dimension_semantics<parallel>], iteration_bounds = array<i64: 2>, scalar_prefetch = 0 : i64, scratch_operands = 0 : i64, tpu.core_type = #tpu.core_type<tc>, window_params = [{transform_indices = @transform_0, window_bounds = array<i64: 1, 9, 32>}, {transform_indices = @transform_1, window_bounds = array<i64: 1, 1, 9>}, {pipeline_mode = #tpu.pipeline_mode<synchronous>, transform_indices = @transform_2, window_bounds = array<i64: 2, 96, 32>}, {pipeline_mode = #tpu.pipeline_mode<synchronous>, transform_indices = @transform_3, window_bounds = array<i64: 2, 1, 96>}, {pipeline_mode = #tpu.pipeline_mode<synchronous>, transform_indices = @transform_4, window_bounds = array<i64: 2, 32, 32>}, {pipeline_mode = #tpu.pipeline_mode<synchronous>, transform_indices = @transform_5, window_bounds = array<i64: 2, 1, 32>}, {pipeline_mode = #tpu.pipeline_mode<synchronous>, transform_indices = @transform_6, window_bounds = array<i64: 5, 32>}, {pipeline_mode = #tpu.pipeline_mode<synchronous>, transform_indices = @transform_7, window_bounds = array<i64: 1, 5>}, {transform_indices = @transform_8, window_bounds = array<i64: 2, 1, 9, 9>}, {transform_indices = @transform_9, window_bounds = array<i64: 1, 1, 5>}]} {
    %c0 = arith.constant 0 : index
    %c0_0 = arith.constant 0 : index
    %c0_1 = arith.constant 0 : index
    %0 = vector.load %arg1[%c0, %c0_0, %c0_1] : memref<1x9x32xf32, #tpu.memory_space<vmem>>, vector<1x9x32xf32>
    %1 = vector.shape_cast %0 : vector<1x9x32xf32> to vector<9x32xf32>
    %c0_2 = arith.constant 0 : index
    %c0_3 = arith.constant 0 : index
    %c0_4 = arith.constant 0 : index
    %2 = vector.load %arg2[%c0_2, %c0_3, %c0_4] : memref<1x1x9xf32, #tpu.memory_space<vmem>>, vector<1x1x9xf32>
    %3 = vector.shape_cast %2 : vector<1x1x9xf32> to vector<1x9xf32>
    %c0_5 = arith.constant 0 : index
    %c0_6 = arith.constant 0 : index
    %c0_7 = arith.constant 0 : index
    %4 = vector.load %arg3[%c0_5, %c0_6, %c0_7] : memref<2x96x32xf32, #tpu.memory_space<vmem>>, vector<1x96x32xf32>
    %5 = vector.shape_cast %4 : vector<1x96x32xf32> to vector<96x32xf32>
    "tpu.trace_start"() <{level = 10 : i32, message = "se,fe->sf"}> : () -> ()
    %cst = arith.constant dense<0.000000e+00> : vector<9x96xf32>
    %6 = tpu.matmul %1, %5, %cst {dimension_numbers = #tpu.dot_dimension_numbers<[1], [1], [0], [0], [0, 0, 1, 0], [], []>} : vector<9x32xf32>, vector<96x32xf32>, vector<9x96xf32> -> vector<9x96xf32>
    "tpu.trace_stop"() : () -> ()
    %c0_8 = arith.constant 0 : index
    %c0_9 = arith.constant 0 : index
    %c0_10 = arith.constant 0 : index
    %7 = vector.load %arg4[%c0_8, %c0_9, %c0_10] : memref<2x1x96xf32, #tpu.memory_space<vmem>>, vector<1x1x96xf32>
    %8 = vector.shape_cast %7 : vector<1x1x96xf32> to vector<1x96xf32>
    %9 = vector.broadcast %8 : vector<1x96xf32> to vector<9x96xf32>
    %10 = arith.addf %6, %9 : vector<9x96xf32>
    %11 = vector.extract_strided_slice %10 {offsets = [0, 0], sizes = [9, 32], strides = [1, 1]} : vector<9x96xf32> to vector<9x32xf32>
    %cst_11 = arith.constant 2.500000e-01 : f32
    %12 = vector.broadcast %cst_11 : f32 to vector<9x32xf32>
    %13 = arith.mulf %11, %12 : vector<9x32xf32>
    %14 = vector.extract_strided_slice %10 {offsets = [0, 32], sizes = [9, 32], strides = [1, 1]} : vector<9x96xf32> to vector<9x32xf32>
    %15 = vector.extract_strided_slice %10 {offsets = [0, 64], sizes = [9, 32], strides = [1, 1]} : vector<9x96xf32> to vector<9x32xf32>
    %c0_12 = arith.constant 0 : index
    %c0_13 = arith.constant 0 : index
    %c0_14 = arith.constant 0 : index
    %16 = vector.load %arg5[%c0_12, %c0_13, %c0_14] : memref<2x32x32xf32, #tpu.memory_space<vmem>>, vector<1x32x32xf32>
    %17 = vector.shape_cast %16 : vector<1x32x32xf32> to vector<32x32xf32>
    %cst_15 = arith.constant 0.000000e+00 : f32
    %18 = vector.broadcast %cst_15 : f32 to vector<9x9xf32>
    %c0_16 = arith.constant 0 : index
    %c0_17 = arith.constant 0 : index
    %c0_18 = arith.constant 0 : index
    %19 = vector.load %arg6[%c0_16, %c0_17, %c0_18] : memref<2x1x32xf32, #tpu.memory_space<vmem>>, vector<1x1x32xf32>
    %20 = vector.shape_cast %19 : vector<1x1x32xf32> to vector<1x32xf32>
    %21 = vector.shape_cast %20 : vector<1x32xf32> to vector<1x32xf32>
    %22 = vector.broadcast %21 : vector<1x32xf32> to vector<9x32xf32>
    %23 = vector.extract_strided_slice %13 {offsets = [0, 0], sizes = [9, 16], strides = [1, 1]} : vector<9x32xf32> to vector<9x16xf32>
    %24 = vector.extract_strided_slice %14 {offsets = [0, 0], sizes = [9, 16], strides = [1, 1]} : vector<9x32xf32> to vector<9x16xf32>
    "tpu.trace_start"() <{level = 10 : i32, message = "qd,kd->qk"}> : () -> ()
    %cst_19 = arith.constant dense<0.000000e+00> : vector<9x9xf32>
    %25 = tpu.matmul %23, %24, %cst_19 {dimension_numbers = #tpu.dot_dimension_numbers<[1], [1], [0], [0], [0, 0, 1, 0], [], []>} : vector<9x16xf32>, vector<9x16xf32>, vector<9x9xf32> -> vector<9x9xf32>
    "tpu.trace_stop"() : () -> ()
    %26 = vector.broadcast %3 : vector<1x9xf32> to vector<9x9xf32>
    %27 = arith.addf %25, %26 : vector<9x9xf32>
    %cst_20 = arith.constant dense<0xFF800000> : vector<9xf32>
    %28 = vector.multi_reduction <maximumf>, %27, %cst_20 [1] : vector<9x9xf32> to vector<9xf32>
    %29 = vector.shape_cast %28 : vector<9xf32> to vector<9x1xf32>
    %30 = vector.broadcast %29 : vector<9x1xf32> to vector<9x9xf32>
    %31 = arith.subf %27, %30 : vector<9x9xf32>
    %32 = math.exp %31 : vector<9x9xf32>
    %cst_21 = arith.constant dense<0.000000e+00> : vector<9xf32>
    %33 = vector.multi_reduction <add>, %32, %cst_21 [1] : vector<9x9xf32> to vector<9xf32>
    %34 = vector.shape_cast %33 : vector<9xf32> to vector<9x1xf32>
    %35 = tpu.reciprocal %34 {approx = true} : vector<9x1xf32> -> vector<9x1xf32>
    %36 = vector.broadcast %35 : vector<9x1xf32> to vector<9x9xf32>
    %37 = arith.mulf %32, %36 : vector<9x9xf32>
    %38 = arith.addf %18, %37 : vector<9x9xf32>
    %39 = vector.extract_strided_slice %15 {offsets = [0, 0], sizes = [9, 16], strides = [1, 1]} : vector<9x32xf32> to vector<9x16xf32>
    "tpu.trace_start"() <{level = 10 : i32, message = "qk,kd->qd"}> : () -> ()
    %cst_22 = arith.constant dense<0.000000e+00> : vector<9x16xf32>
    %40 = tpu.matmul %37, %39, %cst_22 {dimension_numbers = #tpu.dot_dimension_numbers<[1], [0], [0], [1], [0, 0, 1, 1], [], []>} : vector<9x9xf32>, vector<9x16xf32>, vector<9x16xf32> -> vector<9x16xf32>
    "tpu.trace_stop"() : () -> ()
    %41 = vector.extract_strided_slice %17 {offsets = [0, 0], sizes = [32, 16], strides = [1, 1]} : vector<32x32xf32> to vector<32x16xf32>
    "tpu.trace_start"() <{level = 10 : i32, message = "qd,ed->qe"}> : () -> ()
    %cst_23 = arith.constant dense<0.000000e+00> : vector<9x32xf32>
    %42 = tpu.matmul %40, %41, %cst_23 {dimension_numbers = #tpu.dot_dimension_numbers<[1], [1], [0], [0], [0, 0, 1, 0], [], []>} : vector<9x16xf32>, vector<32x16xf32>, vector<9x32xf32> -> vector<9x32xf32>
    "tpu.trace_stop"() : () -> ()
    %43 = arith.addf %22, %42 : vector<9x32xf32>
    %44 = vector.extract_strided_slice %13 {offsets = [0, 16], sizes = [9, 16], strides = [1, 1]} : vector<9x32xf32> to vector<9x16xf32>
    %45 = vector.extract_strided_slice %14 {offsets = [0, 16], sizes = [9, 16], strides = [1, 1]} : vector<9x32xf32> to vector<9x16xf32>
    "tpu.trace_start"() <{level = 10 : i32, message = "qd,kd->qk"}> : () -> ()
    %cst_24 = arith.constant dense<0.000000e+00> : vector<9x9xf32>
    %46 = tpu.matmul %44, %45, %cst_24 {dimension_numbers = #tpu.dot_dimension_numbers<[1], [1], [0], [0], [0, 0, 1, 0], [], []>} : vector<9x16xf32>, vector<9x16xf32>, vector<9x9xf32> -> vector<9x9xf32>
    "tpu.trace_stop"() : () -> ()
    %47 = vector.broadcast %3 : vector<1x9xf32> to vector<9x9xf32>
    %48 = arith.addf %46, %47 : vector<9x9xf32>
    %cst_25 = arith.constant dense<0xFF800000> : vector<9xf32>
    %49 = vector.multi_reduction <maximumf>, %48, %cst_25 [1] : vector<9x9xf32> to vector<9xf32>
    %50 = vector.shape_cast %49 : vector<9xf32> to vector<9x1xf32>
    %51 = vector.broadcast %50 : vector<9x1xf32> to vector<9x9xf32>
    %52 = arith.subf %48, %51 : vector<9x9xf32>
    %53 = math.exp %52 : vector<9x9xf32>
    %cst_26 = arith.constant dense<0.000000e+00> : vector<9xf32>
    %54 = vector.multi_reduction <add>, %53, %cst_26 [1] : vector<9x9xf32> to vector<9xf32>
    %55 = vector.shape_cast %54 : vector<9xf32> to vector<9x1xf32>
    %56 = tpu.reciprocal %55 {approx = true} : vector<9x1xf32> -> vector<9x1xf32>
    %57 = vector.broadcast %56 : vector<9x1xf32> to vector<9x9xf32>
    %58 = arith.mulf %53, %57 : vector<9x9xf32>
    %59 = arith.addf %38, %58 : vector<9x9xf32>
    %60 = vector.extract_strided_slice %15 {offsets = [0, 16], sizes = [9, 16], strides = [1, 1]} : vector<9x32xf32> to vector<9x16xf32>
    "tpu.trace_start"() <{level = 10 : i32, message = "qk,kd->qd"}> : () -> ()
    %cst_27 = arith.constant dense<0.000000e+00> : vector<9x16xf32>
    %61 = tpu.matmul %58, %60, %cst_27 {dimension_numbers = #tpu.dot_dimension_numbers<[1], [0], [0], [1], [0, 0, 1, 1], [], []>} : vector<9x9xf32>, vector<9x16xf32>, vector<9x16xf32> -> vector<9x16xf32>
    "tpu.trace_stop"() : () -> ()
    %62 = vector.extract_strided_slice %17 {offsets = [0, 16], sizes = [32, 16], strides = [1, 1]} : vector<32x32xf32> to vector<32x16xf32>
    "tpu.trace_start"() <{level = 10 : i32, message = "qd,ed->qe"}> : () -> ()
    %cst_28 = arith.constant dense<0.000000e+00> : vector<9x32xf32>
    %63 = tpu.matmul %61, %62, %cst_28 {dimension_numbers = #tpu.dot_dimension_numbers<[1], [1], [0], [0], [0, 0, 1, 0], [], []>} : vector<9x16xf32>, vector<32x16xf32>, vector<9x32xf32> -> vector<9x32xf32>
    "tpu.trace_stop"() : () -> ()
    %64 = arith.addf %43, %63 : vector<9x32xf32>
    %cst_29 = arith.constant 5.000000e-01 : f32
    %65 = vector.broadcast %cst_29 : f32 to vector<9x9xf32>
    %66 = arith.mulf %59, %65 : vector<9x9xf32>
    %c0_30 = arith.constant 0 : index
    %c0_31 = arith.constant 0 : index
    %c0_32 = arith.constant 0 : index
    %c0_33 = arith.constant 0 : index
    %67 = vector.load %arg9[%c0_30, %c0_31, %c0_32, %c0_33] : memref<2x1x9x9xf32, #tpu.memory_space<vmem>>, vector<1x1x9x9xf32>
    %68 = vector.shape_cast %67 : vector<1x1x9x9xf32> to vector<9x9xf32>
    %69 = vector.shape_cast %66 : vector<9x9xf32> to vector<1x1x9x9xf32>
    tpu.vector_store %arg9[%c0_30, %c0_31, %c0_32, %c0_33], %69 {strides = array<i32>} : memref<2x1x9x9xf32, #tpu.memory_space<vmem>>, vector<1x1x9x9xf32>,
    %c1 = arith.constant 1 : index
    %c0_34 = arith.constant 0 : index
    %c0_35 = arith.constant 0 : index
    %70 = vector.load %arg3[%c1, %c0_34, %c0_35] : memref<2x96x32xf32, #tpu.memory_space<vmem>>, vector<1x96x32xf32>
    %71 = vector.shape_cast %70 : vector<1x96x32xf32> to vector<96x32xf32>
    "tpu.trace_start"() <{level = 10 : i32, message = "se,fe->sf"}> : () -> ()
    %cst_36 = arith.constant dense<0.000000e+00> : vector<9x96xf32>
    %72 = tpu.matmul %64, %71, %cst_36 {dimension_numbers = #tpu.dot_dimension_numbers<[1], [1], [0], [0], [0, 0, 1, 0], [], []>} : vector<9x32xf32>, vector<96x32xf32>, vector<9x96xf32> -> vector<9x96xf32>
    "tpu.trace_stop"() : () -> ()
    %c1_37 = arith.constant 1 : index
    %c0_38 = arith.constant 0 : index
    %c0_39 = arith.constant 0 : index
    %73 = vector.load %arg4[%c1_37, %c0_38, %c0_39] : memref<2x1x96xf32, #tpu.memory_space<vmem>>, vector<1x1x96xf32>
    %74 = vector.shape_cast %73 : vector<1x1x96xf32> to vector<1x96xf32>
    %75 = vector.broadcast %74 : vector<1x96xf32> to vector<9x96xf32>
    %76 = arith.addf %72, %75 : vector<9x96xf32>
    %77 = vector.extract_strided_slice %76 {offsets = [0, 0], sizes = [9, 32], strides = [1, 1]} : vector<9x96xf32> to vector<9x32xf32>
    %cst_40 = arith.constant 2.500000e-01 : f32
    %78 = vector.broadcast %cst_40 : f32 to vector<9x32xf32>
    %79 = arith.mulf %77, %78 : vector<9x32xf32>
    %80 = vector.extract_strided_slice %76 {offsets = [0, 32], sizes = [9, 32], strides = [1, 1]} : vector<9x96xf32> to vector<9x32xf32>
    %81 = vector.extract_strided_slice %76 {offsets = [0, 64], sizes = [9, 32], strides = [1, 1]} : vector<9x96xf32> to vector<9x32xf32>
    %c1_41 = arith.constant 1 : index
    %c0_42 = arith.constant 0 : index
    %c0_43 = arith.constant 0 : index
    %82 = vector.load %arg5[%c1_41, %c0_42, %c0_43] : memref<2x32x32xf32, #tpu.memory_space<vmem>>, vector<1x32x32xf32>
    %83 = vector.shape_cast %82 : vector<1x32x32xf32> to vector<32x32xf32>
    %cst_44 = arith.constant 0.000000e+00 : f32
    %84 = vector.broadcast %cst_44 : f32 to vector<9x9xf32>
    %c1_45 = arith.constant 1 : index
    %c0_46 = arith.constant 0 : index
    %c0_47 = arith.constant 0 : index
    %85 = vector.load %arg6[%c1_45, %c0_46, %c0_47] : memref<2x1x32xf32, #tpu.memory_space<vmem>>, vector<1x1x32xf32>
    %86 = vector.shape_cast %85 : vector<1x1x32xf32> to vector<1x32xf32>
    %87 = vector.shape_cast %86 : vector<1x32xf32> to vector<1x32xf32>
    %88 = vector.broadcast %87 : vector<1x32xf32> to vector<9x32xf32>
    %89 = vector.extract_strided_slice %79 {offsets = [0, 0], sizes = [9, 16], strides = [1, 1]} : vector<9x32xf32> to vector<9x16xf32>
    %90 = vector.extract_strided_slice %80 {offsets = [0, 0], sizes = [9, 16], strides = [1, 1]} : vector<9x32xf32> to vector<9x16xf32>
    "tpu.trace_start"() <{level = 10 : i32, message = "qd,kd->qk"}> : () -> ()
    %cst_48 = arith.constant dense<0.000000e+00> : vector<9x9xf32>
    %91 = tpu.matmul %89, %90, %cst_48 {dimension_numbers = #tpu.dot_dimension_numbers<[1], [1], [0], [0], [0, 0, 1, 0], [], []>} : vector<9x16xf32>, vector<9x16xf32>, vector<9x9xf32> -> vector<9x9xf32>
    "tpu.trace_stop"() : () -> ()
    %92 = vector.broadcast %3 : vector<1x9xf32> to vector<9x9xf32>
    %93 = arith.addf %91, %92 : vector<9x9xf32>
    %cst_49 = arith.constant dense<0xFF800000> : vector<9xf32>
    %94 = vector.multi_reduction <maximumf>, %93, %cst_49 [1] : vector<9x9xf32> to vector<9xf32>
    %95 = vector.shape_cast %94 : vector<9xf32> to vector<9x1xf32>
    %96 = vector.broadcast %95 : vector<9x1xf32> to vector<9x9xf32>
    %97 = arith.subf %93, %96 : vector<9x9xf32>
    %98 = math.exp %97 : vector<9x9xf32>
    %cst_50 = arith.constant dense<0.000000e+00> : vector<9xf32>
    %99 = vector.multi_reduction <add>, %98, %cst_50 [1] : vector<9x9xf32> to vector<9xf32>
    %100 = vector.shape_cast %99 : vector<9xf32> to vector<9x1xf32>
    %101 = tpu.reciprocal %100 {approx = true} : vector<9x1xf32> -> vector<9x1xf32>
    %102 = vector.broadcast %101 : vector<9x1xf32> to vector<9x9xf32>
    %103 = arith.mulf %98, %102 : vector<9x9xf32>
    %104 = arith.addf %84, %103 : vector<9x9xf32>
    %105 = vector.extract_strided_slice %81 {offsets = [0, 0], sizes = [9, 16], strides = [1, 1]} : vector<9x32xf32> to vector<9x16xf32>
    "tpu.trace_start"() <{level = 10 : i32, message = "qk,kd->qd"}> : () -> ()
    %cst_51 = arith.constant dense<0.000000e+00> : vector<9x16xf32>
    %106 = tpu.matmul %103, %105, %cst_51 {dimension_numbers = #tpu.dot_dimension_numbers<[1], [0], [0], [1], [0, 0, 1, 1], [], []>} : vector<9x9xf32>, vector<9x16xf32>, vector<9x16xf32> -> vector<9x16xf32>
    "tpu.trace_stop"() : () -> ()
    %107 = vector.extract_strided_slice %83 {offsets = [0, 0], sizes = [32, 16], strides = [1, 1]} : vector<32x32xf32> to vector<32x16xf32>
    "tpu.trace_start"() <{level = 10 : i32, message = "qd,ed->qe"}> : () -> ()
    %cst_52 = arith.constant dense<0.000000e+00> : vector<9x32xf32>
    %108 = tpu.matmul %106, %107, %cst_52 {dimension_numbers = #tpu.dot_dimension_numbers<[1], [1], [0], [0], [0, 0, 1, 0], [], []>} : vector<9x16xf32>, vector<32x16xf32>, vector<9x32xf32> -> vector<9x32xf32>
    "tpu.trace_stop"() : () -> ()
    %109 = arith.addf %88, %108 : vector<9x32xf32>
    %110 = vector.extract_strided_slice %79 {offsets = [0, 16], sizes = [9, 16], strides = [1, 1]} : vector<9x32xf32> to vector<9x16xf32>
    %111 = vector.extract_strided_slice %80 {offsets = [0, 16], sizes = [9, 16], strides = [1, 1]} : vector<9x32xf32> to vector<9x16xf32>
    "tpu.trace_start"() <{level = 10 : i32, message = "qd,kd->qk"}> : () -> ()
    %cst_53 = arith.constant dense<0.000000e+00> : vector<9x9xf32>
    %112 = tpu.matmul %110, %111, %cst_53 {dimension_numbers = #tpu.dot_dimension_numbers<[1], [1], [0], [0], [0, 0, 1, 0], [], []>} : vector<9x16xf32>, vector<9x16xf32>, vector<9x9xf32> -> vector<9x9xf32>
    "tpu.trace_stop"() : () -> ()
    %113 = vector.broadcast %3 : vector<1x9xf32> to vector<9x9xf32>
    %114 = arith.addf %112, %113 : vector<9x9xf32>
    %cst_54 = arith.constant dense<0xFF800000> : vector<9xf32>
    %115 = vector.multi_reduction <maximumf>, %114, %cst_54 [1] : vector<9x9xf32> to vector<9xf32>
    %116 = vector.shape_cast %115 : vector<9xf32> to vector<9x1xf32>
    %117 = vector.broadcast %116 : vector<9x1xf32> to vector<9x9xf32>
    %118 = arith.subf %114, %117 : vector<9x9xf32>
    %119 = math.exp %118 : vector<9x9xf32>
    %cst_55 = arith.constant dense<0.000000e+00> : vector<9xf32>
    %120 = vector.multi_reduction <add>, %119, %cst_55 [1] : vector<9x9xf32> to vector<9xf32>
    %121 = vector.shape_cast %120 : vector<9xf32> to vector<9x1xf32>
    %122 = tpu.reciprocal %121 {approx = true} : vector<9x1xf32> -> vector<9x1xf32>
    %123 = vector.broadcast %122 : vector<9x1xf32> to vector<9x9xf32>
    %124 = arith.mulf %119, %123 : vector<9x9xf32>
    %125 = arith.addf %104, %124 : vector<9x9xf32>
    %126 = vector.extract_strided_slice %81 {offsets = [0, 16], sizes = [9, 16], strides = [1, 1]} : vector<9x32xf32> to vector<9x16xf32>
    "tpu.trace_start"() <{level = 10 : i32, message = "qk,kd->qd"}> : () -> ()
    %cst_56 = arith.constant dense<0.000000e+00> : vector<9x16xf32>
    %127 = tpu.matmul %124, %126, %cst_56 {dimension_numbers = #tpu.dot_dimension_numbers<[1], [0], [0], [1], [0, 0, 1, 1], [], []>} : vector<9x9xf32>, vector<9x16xf32>, vector<9x16xf32> -> vector<9x16xf32>
    "tpu.trace_stop"() : () -> ()
    %128 = vector.extract_strided_slice %83 {offsets = [0, 16], sizes = [32, 16], strides = [1, 1]} : vector<32x32xf32> to vector<32x16xf32>
    "tpu.trace_start"() <{level = 10 : i32, message = "qd,ed->qe"}> : () -> ()
    %cst_57 = arith.constant dense<0.000000e+00> : vector<9x32xf32>
    %129 = tpu.matmul %127, %128, %cst_57 {dimension_numbers = #tpu.dot_dimension_numbers<[1], [1], [0], [0], [0, 0, 1, 0], [], []>} : vector<9x16xf32>, vector<32x16xf32>, vector<9x32xf32> -> vector<9x32xf32>
    "tpu.trace_stop"() : () -> ()
    %130 = arith.addf %109, %129 : vector<9x32xf32>
    %cst_58 = arith.constant 5.000000e-01 : f32
    %131 = vector.broadcast %cst_58 : f32 to vector<9x9xf32>
    %132 = arith.mulf %125, %131 : vector<9x9xf32>
    %c1_59 = arith.constant 1 : index
    %c0_60 = arith.constant 0 : index
    %c0_61 = arith.constant 0 : index
    %c0_62 = arith.constant 0 : index
    %133 = vector.load %arg9[%c1_59, %c0_60, %c0_61, %c0_62] : memref<2x1x9x9xf32, #tpu.memory_space<vmem>>, vector<1x1x9x9xf32>
    %134 = vector.shape_cast %133 : vector<1x1x9x9xf32> to vector<9x9xf32>
    %135 = vector.shape_cast %132 : vector<9x9xf32> to vector<1x1x9x9xf32>
    tpu.vector_store %arg9[%c1_59, %c0_60, %c0_61, %c0_62], %135 {strides = array<i32>} : memref<2x1x9x9xf32, #tpu.memory_space<vmem>>, vector<1x1x9x9xf32>,
    %136 = vector.extract_strided_slice %130 {offsets = [0, 0], sizes = [1, 32], strides = [1, 1]} : vector<9x32xf32> to vector<1x32xf32>
    %c0_63 = arith.constant 0 : index
    %c0_64 = arith.constant 0 : index
    %137 = vector.load %arg7[%c0_63, %c0_64] : memref<5x32xf32, #tpu.memory_space<vmem>>, vector<5x32xf32>
    "tpu.trace_start"() <{level = 10 : i32, message = "ae,ce->ac"}> : () -> ()
    %cst_65 = arith.constant dense<0.000000e+00> : vector<1x5xf32>
    %138 = tpu.matmul %136, %137, %cst_65 {dimension_numbers = #tpu.dot_dimension_numbers<[1], [1], [0], [0], [0, 0, 1, 0], [], []>} : vector<1x32xf32>, vector<5x32xf32>, vector<1x5xf32> -> vector<1x5xf32>
    "tpu.trace_stop"() : () -> ()
    %c0_66 = arith.constant 0 : index
    %c0_67 = arith.constant 0 : index
    %139 = vector.load %arg8[%c0_66, %c0_67] : memref<1x5xf32, #tpu.memory_space<vmem>>, vector<1x5xf32>
    %140 = arith.addf %138, %139 : vector<1x5xf32>
    %c0_68 = arith.constant 0 : index
    %c0_69 = arith.constant 0 : index
    %c0_70 = arith.constant 0 : index
    %141 = vector.load %arg10[%c0_68, %c0_69, %c0_70] : memref<1x1x5xf32, #tpu.memory_space<vmem>>, vector<1x1x5xf32>
    %142 = vector.shape_cast %141 : vector<1x1x5xf32> to vector<1x5xf32>
    %143 = vector.shape_cast %140 : vector<1x5xf32> to vector<1x1x5xf32>
    tpu.vector_store %arg10[%c0_68, %c0_69, %c0_70], %143 {strides = array<i32>} : memref<1x1x5xf32, #tpu.memory_space<vmem>>, vector<1x1x5xf32>,
    return
  }
  func.func @transform_0(%arg0: i32) -> (i32, i32, i32) {
    %c0_i32 = arith.constant 0 : i32
    %c0_i32_0 = arith.constant 0 : i32
    %c0_i32_1 = arith.constant 0 : i32
    return %arg0, %c0_i32, %c0_i32_0 : i32, i32, i32
  }
  func.func @transform_1(%arg0: i32) -> (i32, i32, i32) {
    %c0_i32 = arith.constant 0 : i32
    %c0_i32_0 = arith.constant 0 : i32
    %c0_i32_1 = arith.constant 0 : i32
    return %arg0, %c0_i32, %c0_i32_0 : i32, i32, i32
  }
  func.func @transform_2(%arg0: i32) -> (i32, i32, i32) {
    %c0_i32 = arith.constant 0 : i32
    %c0_i32_0 = arith.constant 0 : i32
    %c0_i32_1 = arith.constant 0 : i32
    %c0_i32_2 = arith.constant 0 : i32
    return %c0_i32, %c0_i32_0, %c0_i32_1 : i32, i32, i32
  }
  func.func @transform_3(%arg0: i32) -> (i32, i32, i32) {
    %c0_i32 = arith.constant 0 : i32
    %c0_i32_0 = arith.constant 0 : i32
    %c0_i32_1 = arith.constant 0 : i32
    %c0_i32_2 = arith.constant 0 : i32
    return %c0_i32, %c0_i32_0, %c0_i32_1 : i32, i32, i32
  }
  func.func @transform_4(%arg0: i32) -> (i32, i32, i32) {
    %c0_i32 = arith.constant 0 : i32
    %c0_i32_0 = arith.constant 0 : i32
    %c0_i32_1 = arith.constant 0 : i32
    %c0_i32_2 = arith.constant 0 : i32
    return %c0_i32, %c0_i32_0, %c0_i32_1 : i32, i32, i32
  }
  func.func @transform_5(%arg0: i32) -> (i32, i32, i32) {
    %c0_i32 = arith.constant 0 : i32
    %c0_i32_0 = arith.constant 0 : i32
    %c0_i32_1 = arith.constant 0 : i32
    %c0_i32_2 = arith.constant 0 : i32
    return %c0_i32, %c0_i32_0, %c0_i32_1 : i32, i32, i32
  }
  func.func @transform_6(%arg0: i32) -> (i32, i32) {
    %c0_i32 = arith.constant 0 : i32
    %c0_i32_0 = arith.constant 0 : i32
    %c0_i32_1 = arith.constant 0 : i32
    return %c0_i32, %c0_i32_0 : i32, i32
  }
  func.func @transform_7(%arg0: i32) -> (i32, i32) {
    %c0_i32 = arith.constant 0 : i32
    %c0_i32_0 = arith.constant 0 : i32
    %c0_i32_1 = arith.constant 0 : i32
    return %c0_i32, %c0_i32_0 : i32, i32
  }
  func.func @transform_8(%arg0: i32) -> (i32, i32, i32, i32) {
    %c0_i32 = arith.constant 0 : i32
    %c0_i32_0 = arith.constant 0 : i32
    %c0_i32_1 = arith.constant 0 : i32
    %c0_i32_2 = arith.constant 0 : i32
    return %c0_i32, %arg0, %c0_i32_0, %c0_i32_1 : i32, i32, i32, i32
  }
  func.func @transform_9(%arg0: i32) -> (i32, i32, i32) {
    %c0_i32 = arith.constant 0 : i32
    %c0_i32_0 = arith.constant 0 : i32
    %c0_i32_1 = arith.constant 0 : i32
    return %arg0, %c0_i32, %c0_i32_0 : i32, i32, i32
  }
}

</mosaic_0001>

<llo_original>
// kernel: tpu_custom_call.1
$region0: #{tpu_custom_call.1}
  #allocation0 [shape = 'u32[]', space=smem, size = 0x4, offset = 0x4, fixed_abs, tag = 'smem constant byte address 0x4 - core index']
  #allocation1 [shape = 'u32[72,128]{1,0:T(1,128)}', space=vmem, size = 0x9000, scoped, tag = 'internal scratch']
  %s0 = inlined_call_operand.vmem [shape: f32[2,9,32], index: 0, kind: input, shape index: {}]
  %s1 = inlined_call_operand.vmem [shape: f32[2,1,9], index: 1, kind: input, shape index: {}]
  %s2 = inlined_call_operand.vmem [shape: f32[2,96,32], index: 2, kind: input, shape index: {}]
  %s3 = inlined_call_operand.vmem [shape: f32[2,1,96], index: 3, kind: input, shape index: {}]
  %s4 = inlined_call_operand.vmem [shape: f32[2,32,32], index: 4, kind: input, shape index: {}]
  %s5 = inlined_call_operand.vmem [shape: f32[2,1,32], index: 5, kind: input, shape index: {}]
  %s6 = inlined_call_operand.vmem [shape: f32[5,32], index: 6, kind: input, shape index: {}]
  %s7 = inlined_call_operand.vmem [shape: f32[1,5], index: 7, kind: input, shape index: {}]
  %s8 = inlined_call_operand.vmem [shape: f32[2,2,9,9], index: 8, kind: output, shape index: {0}]
  %s9 = inlined_call_operand.hbm [shape: f32[2,1,5], index: 9, kind: output, shape index: {1}]
  %10 = xla_tuple %s8, %s9
  %s11 = sld [smem:[#allocation0]]
  $region107: #{tpu_custom_call.1} parent=0
    _
  %s13 = ssub.s32 1, %s11
  %s14 = scalar_select 0, %s13, %s11
  $region1: #{tpu_custom_call.1} parent=0
    #allocation2 [shape = 'u8[32768]{0}', space=vmem, size = 0x8000, scoped, tag = 'output window, operand 0']
    #allocation3 [shape = 'u8[1024]{0}', space=vmem, size = 0x400, scoped, tag = 'output window, operand 1']
    #allocation4 [shape = 's32[2]{0}', space=sflag, size = 0x8, scoped, tag = 'scoped memory for tpu_custom_call.1']
    %15 = vsyncpa [#allocation4], 0
    %s16 = scalar_lea.sflag [#allocation4], 1
    %17 = vsyncpa %s16, 0
    loop: start=0, step=1, limit=4
    $region2: #{tpu_custom_call.1} parent=1 // loop_pre_header
      _
    $region3: #{tpu_custom_call.1} parent=1 // loop_header
      %s19 = sphi 0, %s23
      %p20 = scmp.ge.s32.totalorder %s19, 4
      %s29 = sphi 0, %s31
      %s32 = sphi 0, %s29
      %s33 = sphi 0, %s32
      %s49 = sphi 0, %s33
      %s55 = sphi 0, %s57
      %s58 = sphi 0, %s55
      %s59 = sphi 0, %s58
      %s75 = sphi 0, %s59
      %s79 = sphi 0, %s79
      %s81 = sphi 0, %s79
      %s82 = sphi 0, %s81
      %s96 = sphi 0, %s82
      %s100 = sphi 0, %s100
      %s102 = sphi 0, %s100
      %s103 = sphi 0, %s102
      %s117 = sphi 0, %s103
      %s121 = sphi 0, %s121
      %s123 = sphi 0, %s121
      %s124 = sphi 0, %s123
      %s138 = sphi 0, %s124
      %s142 = sphi 0, %s142
      %s144 = sphi 0, %s142
      %s145 = sphi 0, %s144
      %s159 = sphi 0, %s145
      %s163 = sphi 0, %s163
      %s165 = sphi 0, %s163
      %s166 = sphi 0, %s165
      %s180 = sphi 0, %s166
      %s184 = sphi 0, %s184
      %s186 = sphi 0, %s184
      %s187 = sphi 0, %s186
      %s201 = sphi 0, %s187
      %s207 = sphi 0, %s209
      %s210 = sphi 0, %s207
      %s211 = sphi 0, %s210
      %s227 = sphi 0, %s211
      %s233 = sphi 0, %s235
      %s236 = sphi 0, %s233
      %s237 = sphi 0, %s236
      %s253 = sphi 0, %s237
    $region4: #{tpu_custom_call.1} parent=1 // loop_header_branch
      %22 = sbr.rel (%p20) target = $region8
    $region5: #{tpu_custom_call.1} parent=1 // loop_body
      %s24 = ssub.s32 %s19, 1
      %s25 = ssub.s32 %s19, 2
      %s26 = sadd.s32 %s19, 1
      %s27 = ssub.s32 %s19, %s26
      %p28 = scmp.eq.s32.totalorder %s27, 0
      %s30 = sadd.s32 %s29, 1
      %s31 = scalar_select %p28, %s29, %s30
      %p34 = pneg %p28
      %p35 = scmp.eq.s32.totalorder %s19, 1
      %p36 = por %p34, %p35
      %p37 = scmp.ne.s32.totalorder %s29, %s32
      %p38 = scmp.eq.s32.totalorder %s19, 0
      %p39 = por %p37, %p38
      %p40 = scmp.ne.s32.totalorder %s29, %s32
      %p41 = scmp.eq.s32.totalorder %s24, 1
      %p42 = por %p40, %p41
      %p43 = scmp.ne.s32.totalorder %s32, %s33
      %p44 = scmp.eq.s32.totalorder %s24, 0
      %p45 = por %p43, %p44
      %p46 = scmp.ne.s32.totalorder %s32, %s33
      %p47 = scmp.eq.s32.totalorder %s25, 1
      %p48 = por %p46, %p47
      %p50 = scmp.ne.s32.totalorder %s33, %s49
      %p51 = scmp.eq.s32.totalorder %s25, 0
      %p52 = por %p50, %p51
      %s53 = ssub.s32 %s19, %s26
      %p54 = scmp.eq.s32.totalorder %s53, 0
      %s56 = sadd.s32 %s55, 1
      %s57 = scalar_select %p54, %s55, %s56
      %p60 = pneg %p54
      %p61 = scmp.eq.s32.totalorder %s19, 1
      %p62 = por %p60, %p61
      %p63 = scmp.ne.s32.totalorder %s55, %s58
      %p64 = scmp.eq.s32.totalorder %s19, 0
      %p65 = por %p63, %p64
      %p66 = scmp.ne.s32.totalorder %s55, %s58
      %p67 = scmp.eq.s32.totalorder %s24, 1
      %p68 = por %p66, %p67
      %p69 = scmp.ne.s32.totalorder %s58, %s59
      %p70 = scmp.eq.s32.totalorder %s24, 0
      %p71 = por %p69, %p70
      %p72 = scmp.ne.s32.totalorder %s58, %s59
      %p73 = scmp.eq.s32.totalorder %s25, 1
      %p74 = por %p72, %p73
      %p76 = scmp.ne.s32.totalorder %s59, %s75
      %p77 = scmp.eq.s32.totalorder %s25, 0
      %p78 = por %p76, %p77
      %s80 = sadd.s32 %s79, 1
      %p83 = scmp.eq.s32.totalorder %s19, 1
      %p84 = scmp.ne.s32.totalorder %s79, %s81
      %p85 = scmp.eq.s32.totalorder %s19, 0
      %p86 = por %p84, %p85
      %p87 = scmp.ne.s32.totalorder %s79, %s81
      %p88 = scmp.eq.s32.totalorder %s24, 1
      %p89 = por %p87, %p88
      %p90 = scmp.ne.s32.totalorder %s81, %s82
      %p91 = scmp.eq.s32.totalorder %s24, 0
      %p92 = por %p90, %p91
      %p93 = scmp.ne.s32.totalorder %s81, %s82
      %p94 = scmp.eq.s32.totalorder %s25, 1
      %p95 = por %p93, %p94
      %p97 = scmp.ne.s32.totalorder %s82, %s96
      %p98 = scmp.eq.s32.totalorder %s25, 0
      %p99 = por %p97, %p98
      %s101 = sadd.s32 %s100, 1
      %p104 = scmp.eq.s32.totalorder %s19, 1
      %p105 = scmp.ne.s32.totalorder %s100, %s102
      %p106 = scmp.eq.s32.totalorder %s19, 0
      %p107 = por %p105, %p106
      %p108 = scmp.ne.s32.totalorder %s100, %s102
      %p109 = scmp.eq.s32.totalorder %s24, 1
      %p110 = por %p108, %p109
      %p111 = scmp.ne.s32.totalorder %s102, %s103
      %p112 = scmp.eq.s32.totalorder %s24, 0
      %p113 = por %p111, %p112
      %p114 = scmp.ne.s32.totalorder %s102, %s103
      %p115 = scmp.eq.s32.totalorder %s25, 1
      %p116 = por %p114, %p115
      %p118 = scmp.ne.s32.totalorder %s103, %s117
      %p119 = scmp.eq.s32.totalorder %s25, 0
      %p120 = por %p118, %p119
      %s122 = sadd.s32 %s121, 1
      %p125 = scmp.eq.s32.totalorder %s19, 1
      %p126 = scmp.ne.s32.totalorder %s121, %s123
      %p127 = scmp.eq.s32.totalorder %s19, 0
      %p128 = por %p126, %p127
      %p129 = scmp.ne.s32.totalorder %s121, %s123
      %p130 = scmp.eq.s32.totalorder %s24, 1
      %p131 = por %p129, %p130
      %p132 = scmp.ne.s32.totalorder %s123, %s124
      %p133 = scmp.eq.s32.totalorder %s24, 0
      %p134 = por %p132, %p133
      %p135 = scmp.ne.s32.totalorder %s123, %s124
      %p136 = scmp.eq.s32.totalorder %s25, 1
      %p137 = por %p135, %p136
      %p139 = scmp.ne.s32.totalorder %s124, %s138
      %p140 = scmp.eq.s32.totalorder %s25, 0
      %p141 = por %p139, %p140
      %s143 = sadd.s32 %s142, 1
      %p146 = scmp.eq.s32.totalorder %s19, 1
      %p147 = scmp.ne.s32.totalorder %s142, %s144
      %p148 = scmp.eq.s32.totalorder %s19, 0
      %p149 = por %p147, %p148
      %p150 = scmp.ne.s32.totalorder %s142, %s144
      %p151 = scmp.eq.s32.totalorder %s24, 1
      %p152 = por %p150, %p151
      %p153 = scmp.ne.s32.totalorder %s144, %s145
      %p154 = scmp.eq.s32.totalorder %s24, 0
      %p155 = por %p153, %p154
      %p156 = scmp.ne.s32.totalorder %s144, %s145
      %p157 = scmp.eq.s32.totalorder %s25, 1
      %p158 = por %p156, %p157
      %p160 = scmp.ne.s32.totalorder %s145, %s159
      %p161 = scmp.eq.s32.totalorder %s25, 0
      %p162 = por %p160, %p161
      %s164 = sadd.s32 %s163, 1
      %p167 = scmp.eq.s32.totalorder %s19, 1
      %p168 = scmp.ne.s32.totalorder %s163, %s165
      %p169 = scmp.eq.s32.totalorder %s19, 0
      %p170 = por %p168, %p169
      %p171 = scmp.ne.s32.totalorder %s163, %s165
      %p172 = scmp.eq.s32.totalorder %s24, 1
      %p173 = por %p171, %p172
      %p174 = scmp.ne.s32.totalorder %s165, %s166
      %p175 = scmp.eq.s32.totalorder %s24, 0
      %p176 = por %p174, %p175
      %p177 = scmp.ne.s32.totalorder %s165, %s166
      %p178 = scmp.eq.s32.totalorder %s25, 1
      %p179 = por %p177, %p178
      %p181 = scmp.ne.s32.totalorder %s166, %s180
      %p182 = scmp.eq.s32.totalorder %s25, 0
      %p183 = por %p181, %p182
      %s185 = sadd.s32 %s184, 1
      %p188 = scmp.eq.s32.totalorder %s19, 1
      %p189 = scmp.ne.s32.totalorder %s184, %s186
      %p190 = scmp.eq.s32.totalorder %s19, 0
      %p191 = por %p189, %p190
      %p192 = scmp.ne.s32.totalorder %s184, %s186
      %p193 = scmp.eq.s32.totalorder %s24, 1
      %p194 = por %p192, %p193
      %p195 = scmp.ne.s32.totalorder %s186, %s187
      %p196 = scmp.eq.s32.totalorder %s24, 0
      %p197 = por %p195, %p196
      %p198 = scmp.ne.s32.totalorder %s186, %s187
      %p199 = scmp.eq.s32.totalorder %s25, 1
      %p200 = por %p198, %p199
      %p202 = scmp.ne.s32.totalorder %s187, %s201
      %p203 = scmp.eq.s32.totalorder %s25, 0
      %p204 = por %p202, %p203
      %s205 = ssub.s32 %s19, %s26
      %p206 = scmp.eq.s32.totalorder %s205, 0
      %s208 = sadd.s32 %s207, 1
      %s209 = scalar_select %p206, %s207, %s208
      %p212 = pneg %p206
      %p213 = scmp.eq.s32.totalorder %s19, 1
      %p214 = por %p212, %p213
      %p215 = scmp.ne.s32.totalorder %s207, %s210
      %p216 = scmp.eq.s32.totalorder %s19, 0
      %p217 = por %p215, %p216
      %p218 = scmp.ne.s32.totalorder %s207, %s210
      %p219 = scmp.eq.s32.totalorder %s24, 1
      %p220 = por %p218, %p219
      %p221 = scmp.ne.s32.totalorder %s210, %s211
      %p222 = scmp.eq.s32.totalorder %s24, 0
      %p223 = por %p221, %p222
      %p224 = scmp.ne.s32.totalorder %s210, %s211
      %p225 = scmp.eq.s32.totalorder %s25, 1
      %p226 = por %p224, %p225
      %p228 = scmp.ne.s32.totalorder %s211, %s227
      %p229 = scmp.eq.s32.totalorder %s25, 0
      %p230 = por %p228, %p229
      %s231 = ssub.s32 %s19, %s26
      %p232 = scmp.eq.s32.totalorder %s231, 0
      %s234 = sadd.s32 %s233, 1
      %s235 = scalar_select %p232, %s233, %s234
      %p238 = pneg %p232
      %p239 = scmp.eq.s32.totalorder %s19, 1
      %p240 = por %p238, %p239
      %p241 = scmp.ne.s32.totalorder %s233, %s236
      %p242 = scmp.eq.s32.totalorder %s19, 0
      %p243 = por %p241, %p242
      %p244 = scmp.ne.s32.totalorder %s233, %s236
      %p245 = scmp.eq.s32.totalorder %s24, 1
      %p246 = por %p244, %p245
      %p247 = scmp.ne.s32.totalorder %s236, %s237
      %p248 = scmp.eq.s32.totalorder %s24, 0
      %p249 = por %p247, %p248
      %p250 = scmp.ne.s32.totalorder %s236, %s237
      %p251 = scmp.eq.s32.totalorder %s25, 1
      %p252 = por %p250, %p251
      %p254 = scmp.ne.s32.totalorder %s237, %s253
      %p255 = scmp.eq.s32.totalorder %s25, 0
      %p256 = por %p254, %p255
      %p257 = scmp.le.s32.totalorder 1, %s19
      %p258 = scmp.lt.s32.totalorder %s19, 3
      %p259 = pnand %p257, %p258
      %p260 = pneg %p259
      // Predicated region
      $region9: #{tpu_custom_call.1} parent=5 // pred_check
        _
      $region10: #{tpu_custom_call.1} parent=5 // pred_check_branch
        %262 = sbr.rel (%p259) target = $region12
      $region11: #{tpu_custom_call.1} parent=5 // pred_region
        %s263 = ssub.s32 %s19, 1
        // Predicated region
        $region13: #{tpu_custom_call.1} parent=11 // pred_check
          %p264 = pneg %p92
        $region14: #{tpu_custom_call.1} parent=11 // pred_check_branch
          %266 = sbr.rel (%p264) target = $region16
        $region15: #{tpu_custom_call.1} parent=11 // pred_region
          _
        $region16: #{tpu_custom_call.1} parent=11 // pred_fallthru
          _
        // Predicated region
        $region17: #{tpu_custom_call.1} parent=11 // pred_check
          %p267 = pneg %p113
        $region18: #{tpu_custom_call.1} parent=11 // pred_check_branch
          %269 = sbr.rel (%p267) target = $region20
        $region19: #{tpu_custom_call.1} parent=11 // pred_region
          _
        $region20: #{tpu_custom_call.1} parent=11 // pred_fallthru
          _
        // Predicated region
        $region21: #{tpu_custom_call.1} parent=11 // pred_check
          %p270 = pneg %p134
        $region22: #{tpu_custom_call.1} parent=11 // pred_check_branch
          %272 = sbr.rel (%p270) target = $region24
        $region23: #{tpu_custom_call.1} parent=11 // pred_region
          _
        $region24: #{tpu_custom_call.1} parent=11 // pred_fallthru
          _
        // Predicated region
        $region25: #{tpu_custom_call.1} parent=11 // pred_check
          %p273 = pneg %p155
        $region26: #{tpu_custom_call.1} parent=11 // pred_check_branch
          %275 = sbr.rel (%p273) target = $region28
        $region27: #{tpu_custom_call.1} parent=11 // pred_region
          _
        $region28: #{tpu_custom_call.1} parent=11 // pred_fallthru
          _
        // Predicated region
        $region29: #{tpu_custom_call.1} parent=11 // pred_check
          %p276 = pneg %p176
        $region30: #{tpu_custom_call.1} parent=11 // pred_check_branch
          %278 = sbr.rel (%p276) target = $region32
        $region31: #{tpu_custom_call.1} parent=11 // pred_region
          _
        $region32: #{tpu_custom_call.1} parent=11 // pred_fallthru
          _
        // Predicated region
        $region33: #{tpu_custom_call.1} parent=11 // pred_check
          %p279 = pneg %p197
        $region34: #{tpu_custom_call.1} parent=11 // pred_check_branch
          %281 = sbr.rel (%p279) target = $region36
        $region35: #{tpu_custom_call.1} parent=11 // pred_region
          _
        $region36: #{tpu_custom_call.1} parent=11 // pred_fallthru
          _
      $region12: #{tpu_custom_call.1} parent=5 // pred_fallthru
        _
      %p282 = scmp.lt.s32.totalorder %s19, 2
      // Predicated region
      $region37: #{tpu_custom_call.1} parent=5 // pred_check
        %p283 = pneg %p282
      $region38: #{tpu_custom_call.1} parent=5 // pred_check_branch
        %285 = sbr.rel (%p283) target = $region40
      $region39: #{tpu_custom_call.1} parent=5 // pred_region
        // Predicated region
        $region41: #{tpu_custom_call.1} parent=39 // pred_check
          %p286 = pneg %p39
        $region42: #{tpu_custom_call.1} parent=39 // pred_check_branch
          %288 = sbr.rel (%p286) target = $region44
        $region43: #{tpu_custom_call.1} parent=39 // pred_region
          %p289 = scmp.lt.s32.totalorder %s19, 1
          %s290 = scalar_select %p289, %s19, 1
          %s291 = smul.addr %s290, 2
          %s292 = smul.addr %s291, 8
          %s293 = scalar_lea.vmem %s0, %s292
        $region44: #{tpu_custom_call.1} parent=39 // pred_fallthru
          _
        // Predicated region
        $region45: #{tpu_custom_call.1} parent=39 // pred_check
          %p294 = pneg %p65
        $region46: #{tpu_custom_call.1} parent=39 // pred_check_branch
          %296 = sbr.rel (%p294) target = $region48
        $region47: #{tpu_custom_call.1} parent=39 // pred_region
          %p297 = scmp.lt.s32.totalorder %s19, 1
          %s298 = scalar_select %p297, %s19, 1
          %s299 = scalar_lea.vmem %s1, %s298
        $region48: #{tpu_custom_call.1} parent=39 // pred_fallthru
          _
      $region40: #{tpu_custom_call.1} parent=5 // pred_fallthru
        _
      %p300 = scmp.le.s32.totalorder 1, %s19
      %p301 = scmp.lt.s32.totalorder %s19, 3
      %p302 = pnand %p300, %p301
      %p303 = pneg %p302
      // Predicated region
      $region49: #{tpu_custom_call.1} parent=5 // pred_check
        _
      $region50: #{tpu_custom_call.1} parent=5 // pred_check_branch
        %305 = sbr.rel (%p302) target = $region52
      $region51: #{tpu_custom_call.1} parent=5 // pred_region
        %s306 = ssub.s32 %s19, 1
        %p307 = scmp.lt.s32.totalorder %s24, 1
        %s308 = scalar_select %p307, %s24, 1
        %s309 = smul.addr %s308, 2
        %s310 = smul.addr %s309, 8
        %s311 = scalar_lea.vmem %s0, %s310
        %p312 = pneg %p45
        %p313 = pneg %p42
        %p314 = scmp.lt.s32.totalorder %s24, 1
        %s315 = scalar_select %p314, %s24, 1
        %s316 = scalar_lea.vmem %s1, %s315
        %p317 = pneg %p71
        %p318 = pneg %p68
        %p319 = pneg %p92
        %p320 = pneg %p89
        %p321 = pneg %p113
        %p322 = pneg %p110
        %p323 = pneg %p134
        %p324 = pneg %p131
        %p325 = pneg %p155
        %p326 = pneg %p152
        %p327 = pneg %p176
        %p328 = pneg %p173
        %p329 = pneg %p197
        %p330 = pneg %p194
        %p331 = pneg %p223
        %p332 = pneg %p220
        %s333 = sand.u32 %s210, 1
        %s334 = sand.u32 %s210, 1
        %s335 = smul.addr %s334, 32
        %s336 = scalar_lea.vmem [#allocation2], %s335
        %p337 = pneg %p249
        %p338 = pneg %p246
        %s339 = sand.u32 %s236, 1
        %s340 = scalar_lea.sflag [#allocation4], %s339
        %s341 = sand.u32 %s236, 1
        %s342 = scalar_lea.vmem [#allocation3], %s341
        %p343 = scmp.lt.s32.totalorder %s24, 1
        %s344 = scalar_select %p343, %s24, 1
        %s345 = smul.addr %s344, 2
        %s346 = smul.addr %s345, 8
        %s347 = scalar_lea.vmem %s0, %s346
        %p348 = scmp.lt.s32.totalorder %s24, 1
        %s349 = scalar_select %p348, %s24, 1
        %s350 = scalar_lea.vmem %s1, %s349
        %v351 = vld [vmem:[%s347] sm:$0xff]
        %v352 = vld [vmem:[%s347 + $0x8] sm:$0x1]
        %v353 = vld [vmem:[%s350] sm:$0x1]
        %v354 = vld [vmem:[%s2] sm:$0xff]
        %v355 = vld [vmem:[%s2 + $0x8] sm:$0xff]
        %v356 = vld [vmem:[%s2 + $0x10] sm:$0xff]
        %v357 = vld [vmem:[%s2 + $0x18] sm:$0xff]
        %v358 = vld [vmem:[%s2 + $0x20] sm:$0xff]
        %v359 = vld [vmem:[%s2 + $0x28] sm:$0xff]
        %v360 = vld [vmem:[%s2 + $0x30] sm:$0xff]
        %v361 = vld [vmem:[%s2 + $0x38] sm:$0xff]
        %v362 = vld [vmem:[%s2 + $0x40] sm:$0xff]
        %v363 = vld [vmem:[%s2 + $0x48] sm:$0xff]
        %v364 = vld [vmem:[%s2 + $0x50] sm:$0xff]
        %v365 = vld [vmem:[%s2 + $0x58] sm:$0xff]
        %v366 = vld [vmem:[%s3] sm:$0x1]
        %v368 = vperm.slane %v366, 0
        %vm370 = vcmask 261120
        %v372 = vsel %vm370, %v351, 0
        %v375 = vsel %vm370, %v352, 0
        %v378 = vsel %vm370, %v354, 0
        %v381 = vsel %vm370, %v355, 0
        %v384 = vsel %vm370, %v356, 0
        %v387 = vsel %vm370, %v357, 0
        %v390 = vsel %vm370, %v358, 0
        %v393 = vsel %vm370, %v359, 0
        %v396 = vsel %vm370, %v360, 0
        %v399 = vsel %vm370, %v361, 0
        %v402 = vsel %vm370, %v362, 0
        %v405 = vsel %vm370, %v363, 0
        %v408 = vsel %vm370, %v364, 0
        %v411 = vsel %vm370, %v365, 0
        %413 = vmatpush.xpose.msra.mxu0 0.0
        %414 = vmatpush.xpose.msra.mxu0 0.0
        %415 = vmatpush.xpose.msra.mxu0 0.0
        %416 = vmatpush.xpose.msra.mxu0 0.0
        %417 = vmatpush.xpose.msra.mxu0 %v411
        %418 = vmatpush.xpose.msra.mxu0 %v408
        %419 = vmatpush.xpose.msra.mxu0 %v405
        %420 = vmatpush.xpose.msra.mxu0 %v402
        %421 = vmatpush.xpose.msra.mxu0 %v399
        %422 = vmatpush.xpose.msra.mxu0 %v396
        %423 = vmatpush.xpose.msra.mxu0 %v393
        %424 = vmatpush.xpose.msra.mxu0 %v390
        %425 = vmatpush.xpose.msra.mxu0 %v387
        %426 = vmatpush.xpose.msra.mxu0 %v384
        %427 = vmatpush.xpose.msra.mxu0 %v381
        %428 = vmatpush.xpose.msra.mxu0 %v378
        %429 = vmatmul.f32.gmra.mxu0 %v372
        %v430 = vpop.f32.mrf.mxu0
        %v431 = vadd.f32 %v368, %v430
        %432 = vmatmul.f32.gmra.mxu0 %v375
        %v433 = vpop.f32.mrf.mxu0
        %v434 = vadd.f32 %v368, %v433
        %435 = vdwg.mxu0
        %v436 = vmul.f32 %v431, 0.25
        %v437 = vmul.f32 %v434, 0.25
        %v438 = vld [vmem:[%s4] sm:$0xff]
        %v439 = vld [vmem:[%s4 + $0x8] sm:$0xff]
        %v440 = vld [vmem:[%s4 + $0x10] sm:$0xff]
        %v441 = vld [vmem:[%s4 + $0x18] sm:$0xff]
        %v442 = vld [vmem:[%s5] sm:$0x1]
        %v444 = vperm.slane %v442, 0
        %v447 = vperm.slane %v353, 0
        %451 = vrot.lane.b32.xlu0 %v431, 96
        %v452 = vpop.permute.xlu0 %451
        %453 = vrot.lane.b32.xlu0 %v434, 96
        %v454 = vpop.permute.xlu0 %453
        %vm455 = vcmask 130048
        %v457 = vsel %vm455, %v436, 0
        %v460 = vsel %vm455, %v437, 0
        %v462 = vsel %vm455, %v452, 0
        %v464 = vsel %vm455, %v454, 0
        %466 = vmatpush.xpose.msra.mxu0 0.0
        %467 = vmatpush.xpose.msra.mxu0 0.0
        %468 = vmatpush.xpose.msra.mxu0 0.0
        %469 = vmatpush.xpose.msra.mxu0 0.0
        %470 = vmatpush.xpose.msra.mxu0 0.0
        %471 = vmatpush.xpose.msra.mxu0 0.0
        %472 = vmatpush.xpose.msra.mxu0 0.0
        %473 = vmatpush.xpose.msra.mxu0 0.0
        %474 = vmatpush.xpose.msra.mxu0 0.0
        %475 = vmatpush.xpose.msra.mxu0 0.0
        %476 = vmatpush.xpose.msra.mxu0 0.0
        %477 = vmatpush.xpose.msra.mxu0 0.0
        %478 = vmatpush.xpose.msra.mxu0 0.0
        %479 = vmatpush.xpose.msra.mxu0 0.0
        %480 = vmatpush.xpose.msra.mxu0 %v464
        %481 = vmatpush.xpose.msra.mxu0 %v462
        %482 = vmatmul.f32.gmra.mxu0 %v457
        %v483 = vpop.f32.mrf.mxu0
        %v484 = vadd.f32 %v447, %v483
        %485 = vmatmul.f32.gmra.mxu0 %v460
        %v486 = vpop.f32.mrf.mxu0
        %v487 = vadd.f32 %v447, %v486
        %488 = vdwg.mxu0
        %vm489 = vcmask 72704
        %v490 = vsel %vm489, %v484, -inf
        %491 = vmax.xlane.f32.xlu0 %v490
        %v492 = vpop.xlane.xlu0 %491
        %vm493 = vcmask 65536
        %v494 = vsel %vm493, %v487, -inf
        %495 = vmax.xlane.f32.xlu0 %v494
        %v496 = vpop.xlane.xlu0 %495
        %v497 = vsub.f32 %v484, %v492
        %v498 = vsub.f32 %v487, %v496
        %v499 = vmul.f32 %v497, 1.442695
        %v500 = vpow.pop %v499
        %v501 = vmul.f32 %v498, 1.442695
        %v502 = vpow.pop %v501
        %v503 = vsel %vm489, %v500, 0.0
        %504 = vadd.xlane.f32.xlu0 %v503
        %v505 = vpop.xlane.xlu0 %504
        %v506 = vsel %vm493, %v502, 0.0
        %507 = vadd.xlane.f32.xlu0 %v506
        %v508 = vpop.xlane.xlu0 %507
        %v509 = vrcp.pop %v505
        %v510 = vrcp.pop %v508
        %v511 = vmul.f32 %v500, %v509
        %v512 = vmul.f32 %v502, %v510
        %v513 = vadd.f32 %v511, 0.0
        %v514 = vadd.f32 %v512, 0.0
        %515 = vrot.lane.b32.xlu0 %v431, 64
        %v516 = vpop.permute.xlu0 %515
        %517 = vrot.lane.b32.xlu0 %v434, 64
        %v518 = vpop.permute.xlu0 %517
        %v521 = vsel %vm489, %v511, 0
        %v524 = vsel %vm489, %v512, 0
        %vm526 = vcmask 1040384
        %v527 = vsel %vm526, %v518, 0
        %529 = vmatpush.msra.mxu0 0.0
        %530 = vmatpush.msra.mxu0 0.0
        %531 = vmatpush.msra.mxu0 0.0
        %532 = vmatpush.msra.mxu0 0.0
        %533 = vmatpush.msra.mxu0 0.0
        %534 = vmatpush.msra.mxu0 0.0
        %535 = vmatpush.msra.mxu0 0.0
        %536 = vmatpush.msra.mxu0 0.0
        %537 = vmatpush.msra.mxu0 0.0
        %538 = vmatpush.msra.mxu0 0.0
        %539 = vmatpush.msra.mxu0 0.0
        %540 = vmatpush.msra.mxu0 0.0
        %541 = vmatpush.msra.mxu0 0.0
        %542 = vmatpush.msra.mxu0 0.0
        %543 = vmatpush.msra.mxu0 %v527
        %544 = vmatpush.msra.mxu0 %v516
        %545 = vmatmul.f32.gmra.mxu0 %v521
        %v546 = vpop.f32.mrf.mxu0
        %v547 = vadd.f32 0.0, %v546
        %548 = vmatmul.f32.gmra.mxu0 %v524
        %v549 = vpop.f32.mrf.mxu0
        %v550 = vadd.f32 0.0, %v549
        %551 = vdwg.mxu0
        %v553 = vsel %vm455, %v547, 0
        %v556 = vsel %vm455, %v550, 0
        %v559 = vsel %vm455, %v438, 0
        %v562 = vsel %vm455, %v439, 0
        %v565 = vsel %vm455, %v440, 0
        %v568 = vsel %vm455, %v441, 0
        %570 = vmatpush.xpose.msra.mxu0 0.0
        %571 = vmatpush.xpose.msra.mxu0 0.0
        %572 = vmatpush.xpose.msra.mxu0 0.0
        %573 = vmatpush.xpose.msra.mxu0 0.0
        %574 = vmatpush.xpose.msra.mxu0 0.0
        %575 = vmatpush.xpose.msra.mxu0 0.0
        %576 = vmatpush.xpose.msra.mxu0 0.0
        %577 = vmatpush.xpose.msra.mxu0 0.0
        %578 = vmatpush.xpose.msra.mxu0 0.0
        %579 = vmatpush.xpose.msra.mxu0 0.0
        %580 = vmatpush.xpose.msra.mxu0 0.0
        %581 = vmatpush.xpose.msra.mxu0 0.0
        %582 = vmatpush.xpose.msra.mxu0 %v568
        %583 = vmatpush.xpose.msra.mxu0 %v565
        %584 = vmatpush.xpose.msra.mxu0 %v562
        %585 = vmatpush.xpose.msra.mxu0 %v559
        %586 = vmatmul.f32.gmra.mxu0 %v553
        %v587 = vpop.f32.mrf.mxu0
        %v588 = vadd.f32 0.0, %v587
        %589 = vmatmul.f32.gmra.mxu0 %v556
        %v590 = vpop.f32.mrf.mxu0
        %v591 = vadd.f32 0.0, %v590
        %592 = vdwg.mxu0
        %v593 = vadd.f32 %v444, %v588
        %v594 = vadd.f32 %v444, %v591
        %595 = vrot.lane.b32.xlu0 %v436, 112
        %v596 = vpop.permute.xlu0 %595
        %597 = vrot.lane.b32.xlu0 %v437, 112
        %v598 = vpop.permute.xlu0 %597
        %599 = vrot.lane.b32.xlu0 %v431, 80
        %v600 = vpop.permute.xlu0 %599
        %601 = vrot.lane.b32.xlu0 %v434, 80
        %v602 = vpop.permute.xlu0 %601
        %v603 = vsel %vm455, %v596, 0
        %v605 = vsel %vm455, %v598, 0
        %v607 = vsel %vm455, %v600, 0
        %v609 = vsel %vm455, %v602, 0
        %611 = vmatpush.xpose.msra.mxu0 0.0
        %612 = vmatpush.xpose.msra.mxu0 0.0
        %613 = vmatpush.xpose.msra.mxu0 0.0
        %614 = vmatpush.xpose.msra.mxu0 0.0
        %615 = vmatpush.xpose.msra.mxu0 0.0
        %616 = vmatpush.xpose.msra.mxu0 0.0
        %617 = vmatpush.xpose.msra.mxu0 0.0
        %618 = vmatpush.xpose.msra.mxu0 0.0
        %619 = vmatpush.xpose.msra.mxu0 0.0
        %620 = vmatpush.xpose.msra.mxu0 0.0
        %621 = vmatpush.xpose.msra.mxu0 0.0
        %622 = vmatpush.xpose.msra.mxu0 0.0
        %623 = vmatpush.xpose.msra.mxu0 0.0
        %624 = vmatpush.xpose.msra.mxu0 0.0
        %625 = vmatpush.xpose.msra.mxu0 %v609
        %626 = vmatpush.xpose.msra.mxu0 %v607
        %627 = vmatmul.f32.gmra.mxu0 %v603
        %v628 = vpop.f32.mrf.mxu0
        %v629 = vadd.f32 %v447, %v628
        %630 = vmatmul.f32.gmra.mxu0 %v605
        %v631 = vpop.f32.mrf.mxu0
        %v632 = vadd.f32 %v447, %v631
        %633 = vdwg.mxu0
        %v634 = vsel %vm489, %v629, -inf
        %635 = vmax.xlane.f32.xlu0 %v634
        %v636 = vpop.xlane.xlu0 %635
        %v637 = vsel %vm493, %v632, -inf
        %638 = vmax.xlane.f32.xlu0 %v637
        %v639 = vpop.xlane.xlu0 %638
        %v640 = vsub.f32 %v629, %v636
        %v641 = vsub.f32 %v632, %v639
        %v642 = vmul.f32 %v640, 1.442695
        %v643 = vpow.pop %v642
        %v644 = vmul.f32 %v641, 1.442695
        %v645 = vpow.pop %v644
        %v646 = vsel %vm489, %v643, 0.0
        %647 = vadd.xlane.f32.xlu0 %v646
        %v648 = vpop.xlane.xlu0 %647
        %v649 = vsel %vm493, %v645, 0.0
        %650 = vadd.xlane.f32.xlu0 %v649
        %v651 = vpop.xlane.xlu0 %650
        %v652 = vrcp.pop %v648
        %v653 = vrcp.pop %v651
        %v654 = vmul.f32 %v643, %v652
        %v655 = vmul.f32 %v645, %v653
        %v656 = vadd.f32 %v513, %v654
        %v657 = vadd.f32 %v514, %v655
        %658 = vrot.lane.b32.xlu0 %v431, 48
        %v659 = vpop.permute.xlu0 %658
        %660 = vrot.lane.b32.xlu0 %v434, 48
        %v661 = vpop.permute.xlu0 %660
        %v664 = vsel %vm489, %v654, 0
        %v667 = vsel %vm489, %v655, 0
        %v669 = vsel %vm526, %v661, 0
        %671 = vmatpush.msra.mxu0 0.0
        %672 = vmatpush.msra.mxu0 0.0
        %673 = vmatpush.msra.mxu0 0.0
        %674 = vmatpush.msra.mxu0 0.0
        %675 = vmatpush.msra.mxu0 0.0
        %676 = vmatpush.msra.mxu0 0.0
        %677 = vmatpush.msra.mxu0 0.0
        %678 = vmatpush.msra.mxu0 0.0
        %679 = vmatpush.msra.mxu0 0.0
        %680 = vmatpush.msra.mxu0 0.0
        %681 = vmatpush.msra.mxu0 0.0
        %682 = vmatpush.msra.mxu0 0.0
        %683 = vmatpush.msra.mxu0 0.0
        %684 = vmatpush.msra.mxu0 0.0
        %685 = vmatpush.msra.mxu0 %v669
        %686 = vmatpush.msra.mxu0 %v659
        %687 = vmatmul.f32.gmra.mxu0 %v664
        %v688 = vpop.f32.mrf.mxu0
        %v689 = vadd.f32 0.0, %v688
        %690 = vmatmul.f32.gmra.mxu0 %v667
        %v691 = vpop.f32.mrf.mxu0
        %v692 = vadd.f32 0.0, %v691
        %693 = vdwg.mxu0
        %694 = vrot.lane.b32.xlu0 %v438, 112
        %v695 = vpop.permute.xlu0 %694
        %696 = vrot.lane.b32.xlu0 %v439, 112
        %v697 = vpop.permute.xlu0 %696
        %698 = vrot.lane.b32.xlu0 %v440, 112
        %v699 = vpop.permute.xlu0 %698
        %700 = vrot.lane.b32.xlu0 %v441, 112
        %v701 = vpop.permute.xlu0 %700
        %v703 = vsel %vm455, %v689, 0
        %v706 = vsel %vm455, %v692, 0
        %v708 = vsel %vm455, %v695, 0
        %v710 = vsel %vm455, %v697, 0
        %v712 = vsel %vm455, %v699, 0
        %v714 = vsel %vm455, %v701, 0
        %716 = vmatpush.xpose.msra.mxu0 0.0
        %717 = vmatpush.xpose.msra.mxu0 0.0
        %718 = vmatpush.xpose.msra.mxu0 0.0
        %719 = vmatpush.xpose.msra.mxu0 0.0
        %720 = vmatpush.xpose.msra.mxu0 0.0
        %721 = vmatpush.xpose.msra.mxu0 0.0
        %722 = vmatpush.xpose.msra.mxu0 0.0
        %723 = vmatpush.xpose.msra.mxu0 0.0
        %724 = vmatpush.xpose.msra.mxu0 0.0
        %725 = vmatpush.xpose.msra.mxu0 0.0
        %726 = vmatpush.xpose.msra.mxu0 0.0
        %727 = vmatpush.xpose.msra.mxu0 0.0
        %728 = vmatpush.xpose.msra.mxu0 %v714
        %729 = vmatpush.xpose.msra.mxu0 %v712
        %730 = vmatpush.xpose.msra.mxu0 %v710
        %731 = vmatpush.xpose.msra.mxu0 %v708
        %732 = vmatmul.f32.gmra.mxu0 %v703
        %v733 = vpop.f32.mrf.mxu0
        %v734 = vadd.f32 0.0, %v733
        %735 = vmatmul.f32.gmra.mxu0 %v706
        %v736 = vpop.f32.mrf.mxu0
        %v737 = vadd.f32 0.0, %v736
        %738 = vdwg.mxu0
        %v739 = vadd.f32 %v593, %v734
        %v740 = vadd.f32 %v594, %v737
        %v741 = vmul.f32 %v656, 0.5
        %v742 = vmul.f32 %v657, 0.5
        %743 = vst.msk [vmem:[%s336] sm:$0xff] %vm489, %v741
        %744 = vst.msk [vmem:[%s336 + $0x8] sm:$0x1] %vm493, %v742
        %s745 = scalar_lea.vmem %s2, 96
        %v746 = vld [vmem:[%s745] sm:$0xff]
        %v747 = vld [vmem:[%s745 + $0x8] sm:$0xff]
        %v748 = vld [vmem:[%s745 + $0x10] sm:$0xff]
        %v749 = vld [vmem:[%s745 + $0x18] sm:$0xff]
        %v750 = vld [vmem:[%s745 + $0x20] sm:$0xff]
        %v751 = vld [vmem:[%s745 + $0x28] sm:$0xff]
        %v752 = vld [vmem:[%s745 + $0x30] sm:$0xff]
        %v753 = vld [vmem:[%s745 + $0x38] sm:$0xff]
        %v754 = vld [vmem:[%s745 + $0x40] sm:$0xff]
        %v755 = vld [vmem:[%s745 + $0x48] sm:$0xff]
        %v756 = vld [vmem:[%s745 + $0x50] sm:$0xff]
        %v757 = vld [vmem:[%s745 + $0x58] sm:$0xff]
        %s758 = scalar_lea.vmem %s3, 1
        %v759 = vld [vmem:[%s758] sm:$0x1]
        %v761 = vperm.slane %v759, 0
        %v764 = vsel %vm370, %v739, 0
        %v767 = vsel %vm370, %v740, 0
        %v770 = vsel %vm370, %v746, 0
        %v773 = vsel %vm370, %v747, 0
        %v776 = vsel %vm370, %v748, 0
        %v779 = vsel %vm370, %v749, 0
        %v782 = vsel %vm370, %v750, 0
        %v785 = vsel %vm370, %v751, 0
        %v788 = vsel %vm370, %v752, 0
        %v791 = vsel %vm370, %v753, 0
        %v794 = vsel %vm370, %v754, 0
        %v797 = vsel %vm370, %v755, 0
        %v800 = vsel %vm370, %v756, 0
        %v803 = vsel %vm370, %v757, 0
        %805 = vmatpush.xpose.msra.mxu0 0.0
        %806 = vmatpush.xpose.msra.mxu0 0.0
        %807 = vmatpush.xpose.msra.mxu0 0.0
        %808 = vmatpush.xpose.msra.mxu0 0.0
        %809 = vmatpush.xpose.msra.mxu0 %v803
        %810 = vmatpush.xpose.msra.mxu0 %v800
        %811 = vmatpush.xpose.msra.mxu0 %v797
        %812 = vmatpush.xpose.msra.mxu0 %v794
        %813 = vmatpush.xpose.msra.mxu0 %v791
        %814 = vmatpush.xpose.msra.mxu0 %v788
        %815 = vmatpush.xpose.msra.mxu0 %v785
        %816 = vmatpush.xpose.msra.mxu0 %v782
        %817 = vmatpush.xpose.msra.mxu0 %v779
        %818 = vmatpush.xpose.msra.mxu0 %v776
        %819 = vmatpush.xpose.msra.mxu0 %v773
        %820 = vmatpush.xpose.msra.mxu0 %v770
        %821 = vmatmul.f32.gmra.mxu0 %v764
        %v822 = vpop.f32.mrf.mxu0
        %v823 = vadd.f32 %v761, %v822
        %824 = vmatmul.f32.gmra.mxu0 %v767
        %v825 = vpop.f32.mrf.mxu0
        %v826 = vadd.f32 %v761, %v825
        %827 = vdwg.mxu0
        %v828 = vmul.f32 %v823, 0.25
        %v829 = vmul.f32 %v826, 0.25
        %s830 = scalar_lea.vmem %s4, 32
        %v831 = vld [vmem:[%s830] sm:$0xff]
        %v832 = vld [vmem:[%s830 + $0x8] sm:$0xff]
        %v833 = vld [vmem:[%s830 + $0x10] sm:$0xff]
        %v834 = vld [vmem:[%s830 + $0x18] sm:$0xff]
        %s835 = scalar_lea.vmem %s5, 1
        %v836 = vld [vmem:[%s835] sm:$0x1]
        %v838 = vperm.slane %v836, 0
        %842 = vrot.lane.b32.xlu0 %v823, 96
        %v843 = vpop.permute.xlu0 %842
        %844 = vrot.lane.b32.xlu0 %v826, 96
        %v845 = vpop.permute.xlu0 %844
        %v847 = vsel %vm455, %v828, 0
        %v850 = vsel %vm455, %v829, 0
        %v852 = vsel %vm455, %v843, 0
        %v854 = vsel %vm455, %v845, 0
        %856 = vmatpush.xpose.msra.mxu0 0.0
        %857 = vmatpush.xpose.msra.mxu0 0.0
        %858 = vmatpush.xpose.msra.mxu0 0.0
        %859 = vmatpush.xpose.msra.mxu0 0.0
        %860 = vmatpush.xpose.msra.mxu0 0.0
        %861 = vmatpush.xpose.msra.mxu0 0.0
        %862 = vmatpush.xpose.msra.mxu0 0.0
        %863 = vmatpush.xpose.msra.mxu0 0.0
        %864 = vmatpush.xpose.msra.mxu0 0.0
        %865 = vmatpush.xpose.msra.mxu0 0.0
        %866 = vmatpush.xpose.msra.mxu0 0.0
        %867 = vmatpush.xpose.msra.mxu0 0.0
        %868 = vmatpush.xpose.msra.mxu0 0.0
        %869 = vmatpush.xpose.msra.mxu0 0.0
        %870 = vmatpush.xpose.msra.mxu0 %v854
        %871 = vmatpush.xpose.msra.mxu0 %v852
        %872 = vmatmul.f32.gmra.mxu0 %v847
        %v873 = vpop.f32.mrf.mxu0
        %v874 = vadd.f32 %v447, %v873
        %875 = vmatmul.f32.gmra.mxu0 %v850
        %v876 = vpop.f32.mrf.mxu0
        %v877 = vadd.f32 %v447, %v876
        %878 = vdwg.mxu0
        %v879 = vsel %vm489, %v874, -inf
        %880 = vmax.xlane.f32.xlu0 %v879
        %v881 = vpop.xlane.xlu0 %880
        %v882 = vsel %vm493, %v877, -inf
        %883 = vmax.xlane.f32.xlu0 %v882
        %v884 = vpop.xlane.xlu0 %883
        %v885 = vsub.f32 %v874, %v881
        %v886 = vsub.f32 %v877, %v884
        %v887 = vmul.f32 %v885, 1.442695
        %v888 = vpow.pop %v887
        %v889 = vmul.f32 %v886, 1.442695
        %v890 = vpow.pop %v889
        %v891 = vsel %vm489, %v888, 0.0
        %892 = vadd.xlane.f32.xlu0 %v891
        %v893 = vpop.xlane.xlu0 %892
        %v894 = vsel %vm493, %v890, 0.0
        %895 = vadd.xlane.f32.xlu0 %v894
        %v896 = vpop.xlane.xlu0 %895
        %v897 = vrcp.pop %v893
        %v898 = vrcp.pop %v896
        %v899 = vmul.f32 %v888, %v897
        %v900 = vmul.f32 %v890, %v898
        %v901 = vadd.f32 %v899, 0.0
        %v902 = vadd.f32 %v900, 0.0
        %903 = vrot.lane.b32.xlu0 %v823, 64
        %v904 = vpop.permute.xlu0 %903
        %905 = vrot.lane.b32.xlu0 %v826, 64
        %v906 = vpop.permute.xlu0 %905
        %v909 = vsel %vm489, %v899, 0
        %v912 = vsel %vm489, %v900, 0
        %v914 = vsel %vm526, %v906, 0
        %916 = vmatpush.msra.mxu0 0.0
        %917 = vmatpush.msra.mxu0 0.0
        %918 = vmatpush.msra.mxu0 0.0
        %919 = vmatpush.msra.mxu0 0.0
        %920 = vmatpush.msra.mxu0 0.0
        %921 = vmatpush.msra.mxu0 0.0
        %922 = vmatpush.msra.mxu0 0.0
        %923 = vmatpush.msra.mxu0 0.0
        %924 = vmatpush.msra.mxu0 0.0
        %925 = vmatpush.msra.mxu0 0.0
        %926 = vmatpush.msra.mxu0 0.0
        %927 = vmatpush.msra.mxu0 0.0
        %928 = vmatpush.msra.mxu0 0.0
        %929 = vmatpush.msra.mxu0 0.0
        %930 = vmatpush.msra.mxu0 %v914
        %931 = vmatpush.msra.mxu0 %v904
        %932 = vmatmul.f32.gmra.mxu0 %v909
        %v933 = vpop.f32.mrf.mxu0
        %v934 = vadd.f32 0.0, %v933
        %935 = vmatmul.f32.gmra.mxu0 %v912
        %v936 = vpop.f32.mrf.mxu0
        %v937 = vadd.f32 0.0, %v936
        %938 = vdwg.mxu0
        %v940 = vsel %vm455, %v934, 0
        %v943 = vsel %vm455, %v937, 0
        %v946 = vsel %vm455, %v831, 0
        %v949 = vsel %vm455, %v832, 0
        %v952 = vsel %vm455, %v833, 0
        %v955 = vsel %vm455, %v834, 0
        %957 = vmatpush.xpose.msra.mxu0 0.0
        %958 = vmatpush.xpose.msra.mxu0 0.0
        %959 = vmatpush.xpose.msra.mxu0 0.0
        %960 = vmatpush.xpose.msra.mxu0 0.0
        %961 = vmatpush.xpose.msra.mxu0 0.0
        %962 = vmatpush.xpose.msra.mxu0 0.0
        %963 = vmatpush.xpose.msra.mxu0 0.0
        %964 = vmatpush.xpose.msra.mxu0 0.0
        %965 = vmatpush.xpose.msra.mxu0 0.0
        %966 = vmatpush.xpose.msra.mxu0 0.0
        %967 = vmatpush.xpose.msra.mxu0 0.0
        %968 = vmatpush.xpose.msra.mxu0 0.0
        %969 = vmatpush.xpose.msra.mxu0 %v955
        %970 = vmatpush.xpose.msra.mxu0 %v952
        %971 = vmatpush.xpose.msra.mxu0 %v949
        %972 = vmatpush.xpose.msra.mxu0 %v946
        %973 = vmatmul.f32.gmra.mxu0 %v940
        %v974 = vpop.f32.mrf.mxu0
        %v975 = vadd.f32 0.0, %v974
        %976 = vmatmul.f32.gmra.mxu0 %v943
        %v977 = vpop.f32.mrf.mxu0
        %978 = vdwg.mxu0
        %v979 = vadd.f32 %v838, %v975
        %980 = vrot.lane.b32.xlu0 %v828, 112
        %v981 = vpop.permute.xlu0 %980
        %982 = vrot.lane.b32.xlu0 %v829, 112
        %v983 = vpop.permute.xlu0 %982
        %984 = vrot.lane.b32.xlu0 %v823, 80
        %v985 = vpop.permute.xlu0 %984
        %986 = vrot.lane.b32.xlu0 %v826, 80
        %v987 = vpop.permute.xlu0 %986
        %v988 = vsel %vm455, %v981, 0
        %v990 = vsel %vm455, %v983, 0
        %v992 = vsel %vm455, %v985, 0
        %v994 = vsel %vm455, %v987, 0
        %996 = vmatpush.xpose.msra.mxu0 0.0
        %997 = vmatpush.xpose.msra.mxu0 0.0
        %998 = vmatpush.xpose.msra.mxu0 0.0
        %999 = vmatpush.xpose.msra.mxu0 0.0
        %1000 = vmatpush.xpose.msra.mxu0 0.0
        %1001 = vmatpush.xpose.msra.mxu0 0.0
        %1002 = vmatpush.xpose.msra.mxu0 0.0
        %1003 = vmatpush.xpose.msra.mxu0 0.0
        %1004 = vmatpush.xpose.msra.mxu0 0.0
        %1005 = vmatpush.xpose.msra.mxu0 0.0
        %1006 = vmatpush.xpose.msra.mxu0 0.0
        %1007 = vmatpush.xpose.msra.mxu0 0.0
        %1008 = vmatpush.xpose.msra.mxu0 0.0
        %1009 = vmatpush.xpose.msra.mxu0 0.0
        %1010 = vmatpush.xpose.msra.mxu0 %v994
        %1011 = vmatpush.xpose.msra.mxu0 %v992
        %1012 = vmatmul.f32.gmra.mxu0 %v988
        %v1013 = vpop.f32.mrf.mxu0
        %v1014 = vadd.f32 %v447, %v1013
        %1015 = vmatmul.f32.gmra.mxu0 %v990
        %v1016 = vpop.f32.mrf.mxu0
        %v1017 = vadd.f32 %v447, %v1016
        %1018 = vdwg.mxu0
        %v1019 = vsel %vm489, %v1014, -inf
        %1020 = vmax.xlane.f32.xlu0 %v1019
        %v1021 = vpop.xlane.xlu0 %1020
        %v1022 = vsel %vm493, %v1017, -inf
        %1023 = vmax.xlane.f32.xlu0 %v1022
        %v1024 = vpop.xlane.xlu0 %1023
        %v1025 = vsub.f32 %v1014, %v1021
        %v1026 = vsub.f32 %v1017, %v1024
        %v1027 = vmul.f32 %v1025, 1.442695
        %v1028 = vpow.pop %v1027
        %v1029 = vmul.f32 %v1026, 1.442695
        %v1030 = vpow.pop %v1029
        %v1031 = vsel %vm489, %v1028, 0.0
        %1032 = vadd.xlane.f32.xlu0 %v1031
        %v1033 = vpop.xlane.xlu0 %1032
        %v1034 = vsel %vm493, %v1030, 0.0
        %1035 = vadd.xlane.f32.xlu0 %v1034
        %v1036 = vpop.xlane.xlu0 %1035
        %v1037 = vrcp.pop %v1033
        %v1038 = vrcp.pop %v1036
        %v1039 = vmul.f32 %v1028, %v1037
        %v1040 = vmul.f32 %v1030, %v1038
        %v1041 = vadd.f32 %v901, %v1039
        %v1042 = vadd.f32 %v902, %v1040
        %1043 = vrot.lane.b32.xlu0 %v823, 48
        %v1044 = vpop.permute.xlu0 %1043
        %1045 = vrot.lane.b32.xlu0 %v826, 48
        %v1046 = vpop.permute.xlu0 %1045
        %v1049 = vsel %vm489, %v1039, 0
        %v1052 = vsel %vm489, %v1040, 0
        %v1054 = vsel %vm526, %v1046, 0
        %1056 = vmatpush.msra.mxu0 0.0
        %1057 = vmatpush.msra.mxu0 0.0
        %1058 = vmatpush.msra.mxu0 0.0
        %1059 = vmatpush.msra.mxu0 0.0
        %1060 = vmatpush.msra.mxu0 0.0
        %1061 = vmatpush.msra.mxu0 0.0
        %1062 = vmatpush.msra.mxu0 0.0
        %1063 = vmatpush.msra.mxu0 0.0
        %1064 = vmatpush.msra.mxu0 0.0
        %1065 = vmatpush.msra.mxu0 0.0
        %1066 = vmatpush.msra.mxu0 0.0
        %1067 = vmatpush.msra.mxu0 0.0
        %1068 = vmatpush.msra.mxu0 0.0
        %1069 = vmatpush.msra.mxu0 0.0
        %1070 = vmatpush.msra.mxu0 %v1054
        %1071 = vmatpush.msra.mxu0 %v1044
        %1072 = vmatmul.f32.gmra.mxu0 %v1049
        %v1073 = vpop.f32.mrf.mxu0
        %v1074 = vadd.f32 0.0, %v1073
        %1075 = vmatmul.f32.gmra.mxu0 %v1052
        %v1076 = vpop.f32.mrf.mxu0
        %v1077 = vadd.f32 0.0, %v1076
        %1078 = vdwg.mxu0
        %1079 = vrot.lane.b32.xlu0 %v831, 112
        %v1080 = vpop.permute.xlu0 %1079
        %1081 = vrot.lane.b32.xlu0 %v832, 112
        %v1082 = vpop.permute.xlu0 %1081
        %1083 = vrot.lane.b32.xlu0 %v833, 112
        %v1084 = vpop.permute.xlu0 %1083
        %1085 = vrot.lane.b32.xlu0 %v834, 112
        %v1086 = vpop.permute.xlu0 %1085
        %v1088 = vsel %vm455, %v1074, 0
        %v1091 = vsel %vm455, %v1077, 0
        %v1093 = vsel %vm455, %v1080, 0
        %v1095 = vsel %vm455, %v1082, 0
        %v1097 = vsel %vm455, %v1084, 0
        %v1099 = vsel %vm455, %v1086, 0
        %1101 = vmatpush.xpose.msra.mxu0 0.0
        %1102 = vmatpush.xpose.msra.mxu0 0.0
        %1103 = vmatpush.xpose.msra.mxu0 0.0
        %1104 = vmatpush.xpose.msra.mxu0 0.0
        %1105 = vmatpush.xpose.msra.mxu0 0.0
        %1106 = vmatpush.xpose.msra.mxu0 0.0
        %1107 = vmatpush.xpose.msra.mxu0 0.0
        %1108 = vmatpush.xpose.msra.mxu0 0.0
        %1109 = vmatpush.xpose.msra.mxu0 0.0
        %1110 = vmatpush.xpose.msra.mxu0 0.0
        %1111 = vmatpush.xpose.msra.mxu0 0.0
        %1112 = vmatpush.xpose.msra.mxu0 0.0
        %1113 = vmatpush.xpose.msra.mxu0 %v1099
        %1114 = vmatpush.xpose.msra.mxu0 %v1097
        %1115 = vmatpush.xpose.msra.mxu0 %v1095
        %1116 = vmatpush.xpose.msra.mxu0 %v1093
        %1117 = vmatmul.f32.gmra.mxu0 %v1088
        %v1118 = vpop.f32.mrf.mxu0
        %v1119 = vadd.f32 0.0, %v1118
        %1120 = vmatmul.f32.gmra.mxu0 %v1091
        %v1121 = vpop.f32.mrf.mxu0
        %1122 = vdwg.mxu0
        %v1123 = vadd.f32 %v979, %v1119
        %v1124 = vmul.f32 %v1041, 0.5
        %v1125 = vmul.f32 %v1042, 0.5
        %s1126 = scalar_lea.vmem %s336, 16 [#allocation2]
        %1127 = vst.msk [vmem:[%s1126] sm:$0xff] %vm489, %v1124
        %1128 = vst.msk [vmem:[%s1126 + $0x8] sm:$0x1] %vm493, %v1125
        %v1129 = vld [vmem:[%s6] sm:$0x1f]
        %v1130 = vld [vmem:[%s7] sm:$0x1]
        %v1132 = vsel %vm370, %v1123, 0
        %v1135 = vsel %vm370, %v1129, 0
        %1137 = vmatpush.xpose.msra.mxu0 0.0
        %1138 = vmatpush.xpose.msra.mxu0 0.0
        %1139 = vmatpush.xpose.msra.mxu0 0.0
        %1140 = vmatpush.xpose.msra.mxu0 0.0
        %1141 = vmatpush.xpose.msra.mxu0 0.0
        %1142 = vmatpush.xpose.msra.mxu0 0.0
        %1143 = vmatpush.xpose.msra.mxu0 0.0
        %1144 = vmatpush.xpose.msra.mxu0 0.0
        %1145 = vmatpush.xpose.msra.mxu0 0.0
        %1146 = vmatpush.xpose.msra.mxu0 0.0
        %1147 = vmatpush.xpose.msra.mxu0 0.0
        %1148 = vmatpush.xpose.msra.mxu0 0.0
        %1149 = vmatpush.xpose.msra.mxu0 0.0
        %1150 = vmatpush.xpose.msra.mxu0 0.0
        %1151 = vmatpush.xpose.msra.mxu0 0.0
        %1152 = vmatpush.xpose.msra.mxu0 %v1135
        %1153 = vmatmul.f32.gmra.mxu0 %v1132
        %v1154 = vpop.f32.mrf.mxu0
        %v1155 = vadd.f32 %v1130, %v1154
        %1156 = vdwg.mxu0
        %vm1157 = vcmask 32768
        %1158 = vst.msk [vmem:[%s342] sm:$0x1] %vm1157, %v1155
        %s1159 = sand.u32 %s210, 1
        %s1160 = sand.u32 %s210, 1
        %s1161 = smul.addr %s1160, 32
        %s1162 = scalar_lea.vmem [#allocation2], %s1161
        %s1163 = sand.u32 %s236, 1
        %s1164 = scalar_lea.sflag [#allocation4], %s1163
        %s1165 = sand.u32 %s236, 1
        %s1166 = scalar_lea.vmem [#allocation3], %s1165
        // Predicated region
        $region53: #{tpu_custom_call.1} parent=51 // pred_check
          %p1167 = pneg %p220
        $region54: #{tpu_custom_call.1} parent=51 // pred_check_branch
          %1169 = sbr.rel (%p1167) target = $region56
        $region55: #{tpu_custom_call.1} parent=51 // pred_region
          %s1170 = smul.addr %s24, 2
          %s1171 = smul.addr %s1170, 8
          %s1172 = scalar_lea.vmem %s8, %s1171
          // Predicated region
          $region57: #{tpu_custom_call.1} parent=55 // pred_check
            _
          $region58: #{tpu_custom_call.1} parent=55 // pred_check_branch
            %1174 = sbr.rel (0) target = $region60
          $region59: #{tpu_custom_call.1} parent=55 // pred_region
            // Predicated region
            $region61: #{tpu_custom_call.1} parent=59 // pred_check
              _
            $region62: #{tpu_custom_call.1} parent=59 // pred_check_branch
              %1176 = sbr.rel (0) target = $region64
            $region63: #{tpu_custom_call.1} parent=59 // pred_region
              // Predicated region
              $region76: #{tpu_custom_call.1} parent=63 // pred_check
                _
              $region77: #{tpu_custom_call.1} parent=63 // pred_check_branch
                %1198 = sbr.rel (0) target = $region79
              $region78: #{tpu_custom_call.1} parent=63 // pred_region
                loop: start=0, step=1, limit=1
                $region80: #{tpu_custom_call.1} parent=78 // loop_pre_header
                  _
                $region81: #{tpu_custom_call.1} parent=78 // loop_header
                  %s1200 = sphi 0, %s1204
                  %p1201 = scmp.ge.s32.totalorder %s1200, 1
                  %s1205 = sphi %s1162, %s1162
                  %s1206 = sphi %s1172, %s1172
                $region82: #{tpu_custom_call.1} parent=78 // loop_header_branch
                  %1203 = sbr.rel (%p1201) target = $region86
                $region83: #{tpu_custom_call.1} parent=78 // loop_body
                  %v1207 = vld [vmem:[%s1205] sm:$0xff]
                  %1208 = vst [vmem:[%s1206] sm:$0xff] %v1207
                  %v1209 = vld [vmem:[%s1205 + $0x8] sm:$0xff]
                  %1210 = vst [vmem:[%s1206 + $0x8] sm:$0xff] %v1209
                  %v1211 = vld [vmem:[%s1205 + $0x10] sm:$0xff]
                  %1212 = vst [vmem:[%s1206 + $0x20] sm:$0xff] %v1211
                  %v1213 = vld [vmem:[%s1205 + $0x18] sm:$0xff]
                  %1214 = vst [vmem:[%s1206 + $0x28] sm:$0xff] %v1213
                $region84: #{tpu_custom_call.1} parent=78 // loop_footer
                  %s1204 = sadd.s32 1, %s1200
                $region85: #{tpu_custom_call.1} parent=78 // loop_footer_branch
                  %1199 = sbr.rel target = $region81
                $region86: #{tpu_custom_call.1} parent=78 // loop_exit
                  _
              $region79: #{tpu_custom_call.1} parent=63 // pred_fallthru
                _
              // Predicated region
              $region87: #{tpu_custom_call.1} parent=63 // pred_check
                _
              $region88: #{tpu_custom_call.1} parent=63 // pred_check_branch
                %1216 = sbr.rel target = $region90
              $region89: #{tpu_custom_call.1} parent=63 // pred_region
                _
              $region90: #{tpu_custom_call.1} parent=63 // pred_fallthru
                _
            $region64: #{tpu_custom_call.1} parent=59 // pred_fallthru
              _
            // Predicated region
            $region65: #{tpu_custom_call.1} parent=59 // pred_check
              _
            $region66: #{tpu_custom_call.1} parent=59 // pred_check_branch
              %1178 = sbr.rel target = $region68
            $region67: #{tpu_custom_call.1} parent=59 // pred_region
              %s1180 = ssub.s32 256, 1
              loop: start=0, step=1, limit=1
              $region69: #{tpu_custom_call.1} parent=67 // loop_pre_header
                _
              $region70: #{tpu_custom_call.1} parent=67 // loop_header
                %s1182 = sphi 0, %s1186
                %p1183 = scmp.ge.s32.totalorder %s1182, 1
                %s1187 = sphi %s1162, %s1162
                %s1188 = sphi %s1172, %s1172
              $region71: #{tpu_custom_call.1} parent=67 // loop_header_branch
                %1185 = sbr.rel (%p1183) target = $region75
              $region72: #{tpu_custom_call.1} parent=67 // loop_body
                %v1189 = vld [vmem:[%s1187] sm:%s1180]
                %1190 = vst [vmem:[%s1188] sm:%s1180] %v1189
                %v1191 = vld [vmem:[%s1187 + $0x8] sm:%s1180]
                %1192 = vst [vmem:[%s1188 + $0x8] sm:%s1180] %v1191
                %v1193 = vld [vmem:[%s1187 + $0x10] sm:%s1180]
                %1194 = vst [vmem:[%s1188 + $0x20] sm:%s1180] %v1193
                %v1195 = vld [vmem:[%s1187 + $0x18] sm:%s1180]
                %1196 = vst [vmem:[%s1188 + $0x28] sm:%s1180] %v1195
              $region73: #{tpu_custom_call.1} parent=67 // loop_footer
                %s1186 = sadd.s32 1, %s1182
              $region74: #{tpu_custom_call.1} parent=67 // loop_footer_branch
                %1181 = sbr.rel target = $region70
              $region75: #{tpu_custom_call.1} parent=67 // loop_exit
                _
            $region68: #{tpu_custom_call.1} parent=59 // pred_fallthru
              _
          $region60: #{tpu_custom_call.1} parent=55 // pred_fallthru
            _
          %1217 = vnop
        $region56: #{tpu_custom_call.1} parent=51 // pred_fallthru
          _
        // Predicated region
        $region91: #{tpu_custom_call.1} parent=51 // pred_check
          %p1218 = pneg %p246
        $region92: #{tpu_custom_call.1} parent=51 // pred_check_branch
          %1220 = sbr.rel (%p1218) target = $region94
        $region93: #{tpu_custom_call.1} parent=51 // pred_region
          %1222 = vsyncadd %s1164, 0
          %s1223 = scalar_lea.hbm %s9, %s24
          %s1225 = sshll.u32 %s1166, 4
          %s1226 = int_to_ptr.vmem [resolvable:$true] %s1225
          %s1227 = sshll.u32 %s1223, 4
          %s1228 = int_to_ptr.hbm [resolvable:$true] %s1227
          %1230 = dma.vmem_to_hbm [thread:$0]  %s1226, 16, %s1228, %s1164
        $region94: #{tpu_custom_call.1} parent=51 // pred_fallthru
          _
      $region52: #{tpu_custom_call.1} parent=5 // pred_fallthru
        _
      %p1231 = scmp.le.s32.totalorder 2, %s19
      // Predicated region
      $region95: #{tpu_custom_call.1} parent=5 // pred_check
        %p1232 = pneg %p1231
      $region96: #{tpu_custom_call.1} parent=5 // pred_check_branch
        %1234 = sbr.rel (%p1232) target = $region98
      $region97: #{tpu_custom_call.1} parent=5 // pred_region
        %s1235 = ssub.s32 %s19, 2
        // Predicated region
        $region99: #{tpu_custom_call.1} parent=97 // pred_check
          %p1236 = pneg %p226
        $region100: #{tpu_custom_call.1} parent=97 // pred_check_branch
          %1238 = sbr.rel (%p1236) target = $region102
        $region101: #{tpu_custom_call.1} parent=97 // pred_region
          %s1239 = sand.u32 %s211, 1
          %s1240 = sand.u32 %s211, 1
          %s1241 = smul.addr %s1240, 32
          %s1242 = scalar_lea.vmem [#allocation2], %s1241
        $region102: #{tpu_custom_call.1} parent=97 // pred_fallthru
          _
        // Predicated region
        $region103: #{tpu_custom_call.1} parent=97 // pred_check
          %p1243 = pneg %p252
        $region104: #{tpu_custom_call.1} parent=97 // pred_check_branch
          %1245 = sbr.rel (%p1243) target = $region106
        $region105: #{tpu_custom_call.1} parent=97 // pred_region
          %s1246 = sand.u32 %s237, 1
          %s1247 = scalar_lea.sflag [#allocation4], %s1246
          %s1248 = sand.u32 %s237, 1
          %s1249 = scalar_lea.vmem [#allocation3], %s1248
          %1251 = dma.done %s1247, 16
        $region106: #{tpu_custom_call.1} parent=97 // pred_fallthru
          _
      $region98: #{tpu_custom_call.1} parent=5 // pred_fallthru
        _
    $region6: #{tpu_custom_call.1} parent=1 // loop_footer
      %s23 = sadd.s32 1, %s19
    $region7: #{tpu_custom_call.1} parent=1 // loop_footer_branch
      %18 = sbr.rel target = $region3
    $region8: #{tpu_custom_call.1} parent=1 // loop_exit
      _
    %1252 = vsyncpa [#allocation4], 1
    %s1253 = scalar_lea.sflag [#allocation4], 1
    %1254 = vsyncpa %s1253, 1

</llo_original>
